<compile_context>
chip_gen: v7x
topology: tpu7x:2x2x1
jax: 0.10.0
libtpu: 0.0.40
codegen_flags: <defaults>
</compile_context>

<pallas_src>
import functools
import math

import jax
import jax.numpy as jnp
from jax.experimental import pallas as pl
from jax.experimental.pallas import tpu as pltpu


def _tcl_loss_kernel(*refs, streamed_mask, num_col_blocks, n_pad_cols,
                     loss_scale, static_shift):
    """One (row_block, col_block) grid step of the online TCL loss."""
    if streamed_mask:
        (rowf_ref, colf_ref, mask_ref, sexcl_ref, acorr_ref, pcnt_ref,
         out_ref, m_sc, d_sc, a_sc) = refs
    else:
        (rowf_ref, colf_ref, rowlab_ref, collab_ref, sexcl_ref, acorr_ref,
         pcnt_ref, out_ref, m_sc, d_sc, a_sc) = refs

    # Single top-level program_id; never used inside pl.when bodies
    # (interpret-mode fallback cannot substitute it inside cond branches).
    ci = pl.program_id(1)

    @pl.when(ci == 0)
    def _init():
        if static_shift is None:
            m_sc[...] = jnp.full(m_sc.shape, -jnp.inf, dtype=m_sc.dtype)
        d_sc[...] = jnp.zeros(d_sc.shape, dtype=d_sc.dtype)
        a_sc[...] = jnp.zeros(a_sc.shape, dtype=a_sc.dtype)

    # s[i, j] = <x_i, x_j> / temperature   (1/T pre-folded as 1/sqrt(T) into
    # the features).  Contract the feature axis of both operands (A @ A.T
    # without materializing a transpose); f32 accumulation on the MXU.
    s = jax.lax.dot_general(
        rowf_ref[...], colf_ref[...],
        dimension_numbers=(((1,), (1,)), ((), ())),
        preferred_element_type=jnp.float32)                    # [TM, TN] f32

    # Positive-pair numerator accumulation.
    if streamed_mask:
        w = mask_ref[...].astype(jnp.float32)
        a_sc[...] += jnp.sum(w * s, axis=1, keepdims=True)
    else:
        eq = rowlab_ref[...] == collab_ref[...]                # [TM, TN] bool
        a_sc[...] += jnp.sum(jnp.where(eq, s, 0.0), axis=1, keepdims=True)

    # Softmax denominator: online running max, or a static 1/T shift when the
    # features are known to be L2-normalized (shift-invariant result).
    if static_shift is None:
        m_prev = m_sc[...]
        m_new = jnp.maximum(m_prev, jnp.max(s, axis=1, keepdims=True))
        d_sc[...] = (d_sc[...] * jnp.exp(m_prev - m_new)
                     + jnp.sum(jnp.exp(s - m_new), axis=1, keepdims=True))
        m_sc[...] = m_new
    else:
        d_sc[...] += jnp.sum(jnp.exp(s - jnp.float32(static_shift)),
                             axis=1, keepdims=True)

    @pl.when(ci == num_col_blocks - 1)
    def _finalize():
        if static_shift is None:
            m_i = m_sc[...]
        else:
            m_i = jnp.full(d_sc.shape, static_shift, dtype=jnp.float32)
        d_i = d_sc[...]

        # (1) Remove the zero-padded columns' exp(0 - m) terms from the denom.
        if n_pad_cols > 0:
            d_i = d_i - jnp.float32(n_pad_cols) * jnp.exp(-m_i)
        # (2) Self-similarity exclusion (torch's logits_mask applies only to
        #     rows < bsz); sexcl is s[i,i] there and -1e30 elsewhere.
        d_i = d_i - jnp.exp(sexcl_ref[...] - m_i)
        d_i = jnp.maximum(d_i, 0.0)                    # guard fp cancellation

        a_i = a_sc[...] - acorr_ref[...]               # remove w[i,i]*s[i,i]
        c_i = pcnt_ref[...]                            # precomputed mask.sum(1)

        log_denom = jnp.log(d_i + 1e-9)
        num = a_i - c_i * (m_i + log_denom)
        num = jnp.where(c_i == 0.0, 0.0, num)          # no positives -> 0
        # (TM, 1) store is lane-sparse but only fires once per row block.
        out_ref[...] = (-loss_scale) * (num / (c_i + 1e-9))


def _round_up(x, m):
    return (x + m - 1) // m * m


def tcl_loss(features, labels=None, mask=None, pair_weights=None,
             temperature=0.1, contrast_mode='all', base_temperature=0.07,
             single_view_mode=False, block_size=None,
             matmul_dtype=jnp.bfloat16, mask_dtype=jnp.bfloat16,
             assume_normalized=False, column_buffering=2):
    """JAX/Pallas equivalent of TCLLoss.forward. Returns a scalar f32 loss.

    Note: at very low temperatures (T <= ~0.05) prefer matmul_dtype=float32,
    since bf16 rounding of the 1/sqrt(T)-scaled features shows up in the
    exponent of the softmax.
    """
    if float(temperature) <= 0.0:
        raise ValueError('temperature must be positive')
    features = jnp.asarray(features, jnp.float32)

    if single_view_mode:
        if features.ndim == 3 and features.shape[1] == 1:
            features = jnp.squeeze(features, axis=1)
    elif features.ndim < 3:
        raise ValueError('`features` needs to be [bsz, n_views, ...], '
                         'at least 3 dimensions are required')

    batch_size = features.shape[0]

    if labels is not None and mask is not None:
        raise ValueError('Cannot define both `labels` and `mask`')

    # Base (bsz x bsz) positive mask + (optionally) an exact label vector that
    # lets the kernel rebuild the mask per tile instead of streaming it.
    label_vec = None
    if labels is not None:
        labels = jnp.reshape(jnp.asarray(labels), (-1,))
        if labels.shape[0] != batch_size:
            raise ValueError('Num of labels does not match num of features')
        if pair_weights is None and jnp.issubdtype(labels.dtype, jnp.integer):
            label_vec = labels.astype(jnp.int32)
        base_mask = (labels[:, None] == labels[None, :]).astype(jnp.float32)
    elif mask is None:
        if pair_weights is None:
            label_vec = jnp.arange(batch_size, dtype=jnp.int32)   # eye mask
        base_mask = jnp.eye(batch_size, dtype=jnp.float32)
    else:
        base_mask = jnp.asarray(mask, jnp.float32)

    if (not single_view_mode) and features.ndim > 3:
        features = features.reshape(features.shape[0], features.shape[1], -1)

    if pair_weights is not None:
        pair_weights = jnp.asarray(pair_weights, jnp.float32)
        if pair_weights.shape != base_mask.shape:
            raise ValueError('pair_weights must have the same shape as mask')
        base_mask = base_mask * pair_weights

    # Anchor matrix as [n_views_eff, bsz, d] (view-major rows), no concat copies.
    if single_view_mode:
        if features.ndim > 2:
            # TODO(synk): torch would attempt a (broken) batched 3-D matmul
            # here; flatten trailing dims instead.
            features = features.reshape(batch_size, -1)
        anchors = features[None]
    elif contrast_mode == 'all':
        anchors = jnp.swapaxes(features, 0, 1)            # [n_views, bsz, d]
    else:
        # TODO(synk): torch's contrast_mode='one' branch feeds a 3-D tensor
        # into a 2-D matmul (ill-defined); standard 'one' semantics used.
        anchors = features[:, 0][None]

    n_views_eff, _, feat_dim = anchors.shape

    # --- tiling ----------------------------------------------------------
    if block_size is None:
        tn = 256 if batch_size > 128 else 128              # col tile (lane dim)
    else:
        tn = int(block_size)
        if tn % 128 != 0:
            raise ValueError('block_size must be a multiple of 128')
    bsz_pad = _round_up(batch_size, tn)
    n_pad = bsz_pad - batch_size
    n_total = n_views_eff * bsz_pad

    # Larger resident row tile amortizes the column/mask streams; keep >= 2
    # row blocks so both v7x TensorCores are used on the parallel row axis.
    tm = tn
    for mult in (4, 2):
        cand = tn * mult
        if bsz_pad % cand == 0 and (n_total // cand) >= 2:
            tm = cand
            break
    rblocks_per_view = bsz_pad // tm
    cblocks_per_view = bsz_pad // tn
    num_row_blocks = n_total // tm
    num_col_blocks = n_total // tn
    n_pad_cols = n_views_eff * n_pad
    feat_pad = _round_up(feat_dim, 128)                    # full-lane features

    # --- features: fold 1/T as 1/sqrt(T), zero-pad rows + feature dim -----
    inv_sqrt_t = 1.0 / math.sqrt(float(temperature))
    anchors = anchors * jnp.float32(inv_sqrt_t)
    anchors = jnp.pad(anchors, ((0, 0), (0, n_pad), (0, feat_pad - feat_dim)))
    feat2d = anchors.reshape(n_total, feat_pad).astype(matmul_dtype)

    # --- per-row precomputed quantities (replace in-kernel reductions) ----
    streamed = label_vec is None
    if streamed:
        base_stream = jnp.pad(base_mask, ((0, n_pad), (0, n_pad))).astype(mask_dtype)
        base_f32 = base_stream.astype(jnp.float32)          # rounded, consistent
        diag_view = jnp.diagonal(base_f32)                   # (bsz_pad,)
        rowsum_view = jnp.sum(base_f32, axis=1)               # (bsz_pad,)
    else:
        base_stream = None
        diag_view = jnp.pad(jnp.diagonal(base_mask), (0, n_pad))
        rowsum_view = jnp.pad(jnp.sum(base_mask, axis=1), (0, n_pad))

    feat_f32 = feat2d.astype(jnp.float32)
    s_self = jnp.sum(feat_f32 * feat_f32, axis=1)            # (n_total,) == s[i,i]

    row_in_view = jnp.tile(jnp.arange(bsz_pad), n_views_eff)
    view_id = jnp.repeat(jnp.arange(n_views_eff), bsz_pad)
    is_excl = (view_id == 0) & (row_in_view < batch_size)    # torch: rows < bsz

    diag_row = jnp.tile(diag_view, n_views_eff)
    rowsum_row = jnp.tile(rowsum_view, n_views_eff)

    pos_count = (n_views_eff * rowsum_row
                 - jnp.where(is_excl, diag_row, 0.0))         # == mask.sum(1)
    sexcl = jnp.where(is_excl, s_self, -1e30)                 # -> exp()==0 when off
    acorr = jnp.where(is_excl, diag_row, 0.0) * s_self        # w[i,i]*s[i,i]

    pos_count = pos_count.reshape(n_total, 1).astype(jnp.float32)
    sexcl = sexcl.reshape(n_total, 1).astype(jnp.float32)
    acorr = acorr.reshape(n_total, 1).astype(jnp.float32)

    if not streamed:
        # Pad sentinel is irrelevant for correctness: padded columns have zero
        # features (s=0) and pos_count is precomputed without them.
        lab_pad = jnp.concatenate(
            [label_vec, jnp.full((n_pad,), -1, dtype=jnp.int32)])
        row_labels = lab_pad.reshape(bsz_pad, 1)
        col_labels = lab_pad.reshape(1, bsz_pad)

    static_shift = (1.0 / float(temperature)) if assume_normalized else None

    kernel = functools.partial(
        _tcl_loss_kernel,
        streamed_mask=streamed,
        num_col_blocks=num_col_blocks,
        n_pad_cols=n_pad_cols,
        loss_scale=float(temperature) / float(base_temperature),
        static_shift=static_shift)

    # --- specs -------------------------------------------------------------
    stream_kwargs = {}
    if column_buffering and int(column_buffering) > 2:
        stream_kwargs = dict(pipeline_mode=pl.Buffered(int(column_buffering)))

    row_spec = pl.BlockSpec((tm, feat_pad), lambda ri, ci: (ri, 0))
    colf_spec = pl.BlockSpec((tn, feat_pad), lambda ri, ci: (ci, 0),
                             **stream_kwargs)
    vec_spec = pl.BlockSpec((tm, 1), lambda ri, ci: (ri, 0))

    if streamed:
        mask_spec = pl.BlockSpec(
            (tm, tn),
            lambda ri, ci: (ri % rblocks_per_view, ci % cblocks_per_view),
            **stream_kwargs)
        in_specs = [row_spec, colf_spec, mask_spec, vec_spec, vec_spec, vec_spec]
        inputs = (feat2d, feat2d, base_stream, sexcl, acorr, pos_count)
    else:
        rowlab_spec = pl.BlockSpec((tm, 1),
                                   lambda ri, ci: (ri % rblocks_per_view, 0))
        collab_spec = pl.BlockSpec((1, tn),
                                   lambda ri, ci: (0, ci % cblocks_per_view))
        in_specs = [row_spec, colf_spec, rowlab_spec, collab_spec,
                    vec_spec, vec_spec, vec_spec]
        inputs = (feat2d, feat2d, row_labels, col_labels, sexcl, acorr, pos_count)

    # VMEM budget: ~4x the actual working set, capped under v7x's 64 MiB.
    feat_bytes = jnp.dtype(matmul_dtype).itemsize
    mask_bytes = jnp.dtype(mask_dtype).itemsize if streamed else 0
    bufs = max(2, int(column_buffering))
    vmem_est = (2 * tm * feat_pad * feat_bytes          # resident row tile
                + bufs * tn * feat_pad * feat_bytes     # streamed column tiles
                + bufs * tm * tn * mask_bytes           # streamed mask tiles
                + 6 * tm * tn * 4                       # f32 logits temporaries
                + 16 * tm * 4 + 4 * tn * 4)             # scratch + row vectors
    vmem_limit = int(min(max(4 * vmem_est, 16 * 1024 * 1024),
                         56 * 1024 * 1024))

    out = pl.pallas_call(
        kernel,
        out_shape=jax.ShapeDtypeStruct((n_total, 1), jnp.float32),
        grid_spec=pltpu.PrefetchScalarGridSpec(
            num_scalar_prefetch=0,
            grid=(num_row_blocks, num_col_blocks),
            in_specs=in_specs,
            out_specs=pl.BlockSpec((tm, 1), lambda ri, ci: (ri, 0)),
            scratch_shapes=[pltpu.VMEM((tm, 1), jnp.float32)] * 3,
        ),
        compiler_params=pltpu.CompilerParams(
            dimension_semantics=("parallel", "arbitrary"),
            vmem_limit_bytes=vmem_limit),
    )(*inputs)

    per_anchor = out[:, 0].reshape(n_views_eff, bsz_pad)[:, :batch_size]
    return jnp.mean(per_anchor)


def _tcl_loss_ref(features, labels=None, mask=None, pair_weights=None,
                  temperature=0.1, contrast_mode='all', base_temperature=0.07,
                  single_view_mode=False):
    """Pure-JAX reference mirroring the PyTorch forward."""
    features = jnp.asarray(features, jnp.float32)
    if single_view_mode and features.ndim == 3 and features.shape[1] == 1:
        features = jnp.squeeze(features, 1)
    bsz = features.shape[0]
    if labels is not None:
        labels = jnp.reshape(jnp.asarray(labels), (-1, 1))
        mask = (labels == labels.T).astype(jnp.float32)
    elif mask is None:
        mask = jnp.eye(bsz, dtype=jnp.float32)
    mask = jnp.asarray(mask, jnp.float32)
    if pair_weights is not None:
        mask = mask * jnp.asarray(pair_weights, jnp.float32)
    if single_view_mode:
        anchor = features
    elif contrast_mode == 'all':
        n_views = features.shape[1]
        anchor = jnp.concatenate([features[:, v] for v in range(n_views)], 0)
        mask = jnp.tile(mask, (n_views, n_views))
    else:
        anchor = features[:, 0]
    adc = (anchor @ anchor.T) / temperature
    logits = adc - jnp.max(adc, axis=1, keepdims=True)
    n = anchor.shape[0]
    rows = jnp.arange(n)[:, None]
    cols = jnp.arange(n)[None, :]
    logits_mask = jnp.where((rows == cols) & (rows < bsz), 0.0, 1.0)
    mask = mask * logits_mask
    exp_logits = jnp.exp(logits) * logits_mask
    log_prob = logits - jnp.log(exp_logits.sum(1, keepdims=True) + 1e-9)
    mlpp = (mask * log_prob).sum(1) / (mask.sum(1) + 1e-9)
    return jnp.mean(-(temperature / base_temperature) * mlpp)


if __name__ == "__main__":
    key = jax.random.PRNGKey(0)
    bsz, n_views, d = 8, 2, 32
    kf, kl, kw = jax.random.split(key, 3)
    features = jax.random.normal(kf, (bsz, n_views, d), dtype=jnp.float32)
    features = features / jnp.linalg.norm(features, axis=-1, keepdims=True)
    labels = jax.random.randint(kl, (bsz,), 0, 3)

    # 1) Unsupervised (eye mask), 'all', f32 matmul, in-kernel label mask.
    out = jax.block_until_ready(tcl_loss(features, matmul_dtype=jnp.float32))
    ref = _tcl_loss_ref(features)
    assert jnp.allclose(out, ref, rtol=2e-2, atol=2e-2), (out, ref)

    # 2) Same, using the static 1/T shift for L2-normalized features.
    out = jax.block_until_ready(
        tcl_loss(features, matmul_dtype=jnp.float32, assume_normalized=True))
    assert jnp.allclose(out, ref, rtol=2e-2, atol=2e-2), (out, ref)

    # 3) Supervised (labels), default bf16 matmul, in-kernel label mask.
    out = jax.block_until_ready(tcl_loss(features, labels=labels))
    ref = _tcl_loss_ref(features, labels=labels)
    assert jnp.allclose(out, ref, rtol=3e-2, atol=3e-2), (out, ref)

    # 4) Supervised with pair_weights: streamed bf16 mask path, f32 matmul.
    pw = jax.random.uniform(kw, (bsz, bsz), minval=0.5, maxval=1.5)
    out = jax.block_until_ready(
        tcl_loss(features, labels=labels, pair_weights=pw,
                 matmul_dtype=jnp.float32))
    ref = _tcl_loss_ref(features, labels=labels, pair_weights=pw)
    assert jnp.allclose(out, ref, rtol=3e-2, atol=3e-2), (out, ref)

    # 5) contrast_mode='one' with the default eye mask: every anchor loses its
    #    only positive to the self-exclusion -> loss is exactly 0.
    out = jax.block_until_ready(tcl_loss(features, contrast_mode='one'))
    ref = _tcl_loss_ref(features, contrast_mode='one')
    assert abs(float(out)) < 1e-6 and abs(float(ref)) < 1e-6, (out, ref)

    # 6) single_view_mode with 2-D features and labels, f32 matmul.
    feats_sv = features[:, 0]
    out = jax.block_until_ready(
        tcl_loss(feats_sv, labels=labels, single_view_mode=True,
                 matmul_dtype=jnp.float32))
    ref = _tcl_loss_ref(feats_sv, labels=labels, single_view_mode=True)
    assert jnp.allclose(out, ref, rtol=2e-2, atol=2e-2), (out, ref)

    print("KERNEL_OK")
</pallas_src>

<mosaic_0001>
module attributes {stable_mosaic.version = 11 : i64} {
  func.func @_tcl_loss_kernel(%arg0: i32, %arg1: i32, %arg2: memref<128x128xf32, #tpu.memory_space<vmem>>, %arg3: memref<128x128xf32, #tpu.memory_space<vmem>>, %arg4: memref<128x1xi32, #tpu.memory_space<vmem>>, %arg5: memref<1x128xi32, #tpu.memory_space<vmem>>, %arg6: memref<128x1xf32, #tpu.memory_space<vmem>>, %arg7: memref<128x1xf32, #tpu.memory_space<vmem>>, %arg8: memref<128x1xf32, #tpu.memory_space<vmem>>, %arg9: memref<128x1xf32, #tpu.memory_space<vmem>>, %arg10: memref<128x1xf32, #tpu.memory_space<vmem>>, %arg11: memref<128x1xf32, #tpu.memory_space<vmem>>, %arg12: memref<128x1xf32, #tpu.memory_space<vmem>>) attributes {dimension_semantics = [#tpu.dimension_semantics<parallel>, #tpu.dimension_semantics<arbitrary>], iteration_bounds = array<i64: 2, 2>, scalar_prefetch = 0 : i64, scratch_operands = 3 : i64, tpu.core_type = #tpu.core_type<tc>, window_params = [{transform_indices = @transform_0, window_bounds = array<i64: 128, 128>}, {transform_indices = @transform_1, window_bounds = array<i64: 128, 128>}, {transform_indices = @transform_2, window_bounds = array<i64: 128, 1>}, {transform_indices = @transform_3, window_bounds = array<i64: 1, 128>}, {transform_indices = @transform_4, window_bounds = array<i64: 128, 1>}, {transform_indices = @transform_5, window_bounds = array<i64: 128, 1>}, {transform_indices = @transform_6, window_bounds = array<i64: 128, 1>}, {transform_indices = @transform_7, window_bounds = array<i64: 128, 1>}]} {
    %c0_i32 = arith.constant 0 : i32
    %0 = arith.cmpi eq, %arg1, %c0_i32 : i32
    %1 = arith.extui %0 : i1 to i32
    %c0_i32_0 = arith.constant 0 : i32
    %2 = arith.cmpi ne, %1, %c0_i32_0 : i32
    scf.if %2 {
      %cst_25 = arith.constant 0xFF800000 : f32
      %37 = vector.broadcast %cst_25 : f32 to vector<128x1xf32>
      %c0_26 = arith.constant 0 : index
      %c0_27 = arith.constant 0 : index
      %38 = vector.load %arg10[%c0_26, %c0_27] : memref<128x1xf32, #tpu.memory_space<vmem>>, vector<128x1xf32>
      tpu.vector_store %arg10[%c0_26, %c0_27], %37 {strides = array<i32>} : memref<128x1xf32, #tpu.memory_space<vmem>>, vector<128x1xf32>,
      %cst_28 = arith.constant 0.000000e+00 : f32
      %39 = vector.broadcast %cst_28 : f32 to vector<128x1xf32>
      %c0_29 = arith.constant 0 : index
      %c0_30 = arith.constant 0 : index
      %40 = vector.load %arg11[%c0_29, %c0_30] : memref<128x1xf32, #tpu.memory_space<vmem>>, vector<128x1xf32>
      tpu.vector_store %arg11[%c0_29, %c0_30], %39 {strides = array<i32>} : memref<128x1xf32, #tpu.memory_space<vmem>>, vector<128x1xf32>,
      %cst_31 = arith.constant 0.000000e+00 : f32
      %41 = vector.broadcast %cst_31 : f32 to vector<128x1xf32>
      %c0_32 = arith.constant 0 : index
      %c0_33 = arith.constant 0 : index
      %42 = vector.load %arg12[%c0_32, %c0_33] : memref<128x1xf32, #tpu.memory_space<vmem>>, vector<128x1xf32>
      tpu.vector_store %arg12[%c0_32, %c0_33], %41 {strides = array<i32>} : memref<128x1xf32, #tpu.memory_space<vmem>>, vector<128x1xf32>,
    } else {
    }
    %c0 = arith.constant 0 : index
    %c0_1 = arith.constant 0 : index
    %3 = vector.load %arg2[%c0, %c0_1] : memref<128x128xf32, #tpu.memory_space<vmem>>, vector<128x128xf32>
    %c0_2 = arith.constant 0 : index
    %c0_3 = arith.constant 0 : index
    %4 = vector.load %arg3[%c0_2, %c0_3] : memref<128x128xf32, #tpu.memory_space<vmem>>, vector<128x128xf32>
    %cst = arith.constant dense<0.000000e+00> : vector<128x128xf32>
    %5 = tpu.matmul %3, %4, %cst {dimension_numbers = #tpu.dot_dimension_numbers<[1], [1], [0], [0], [0, 0, 1, 0], [], []>} : vector<128x128xf32>, vector<128x128xf32>, vector<128x128xf32> -> vector<128x128xf32>
    %c0_4 = arith.constant 0 : index
    %c0_5 = arith.constant 0 : index
    %6 = vector.load %arg4[%c0_4, %c0_5] : memref<128x1xi32, #tpu.memory_space<vmem>>, vector<128x1xi32>
    %c0_6 = arith.constant 0 : index
    %c0_7 = arith.constant 0 : index
    %7 = vector.load %arg5[%c0_6, %c0_7] : memref<1x128xi32, #tpu.memory_space<vmem>>, vector<1x128xi32>
    %8 = vector.broadcast %6 : vector<128x1xi32> to vector<128x128xi32>
    %9 = vector.broadcast %7 : vector<1x128xi32> to vector<128x128xi32>
    %10 = arith.cmpi eq, %8, %9 : vector<128x128xi32>
    %c0_8 = arith.constant 0 : index
    %c0_9 = arith.constant 0 : index
    %11 = vector.load %arg12[%c0_8, %c0_9] : memref<128x1xf32, #tpu.memory_space<vmem>>, vector<128x1xf32>
    %cst_10 = arith.constant 0.000000e+00 : f32
    %12 = vector.broadcast %cst_10 : f32 to vector<128x128xf32>
    %13 = arith.select %10, %5, %12 : vector<128x128xi1>, vector<128x128xf32>
    %cst_11 = arith.constant dense<0.000000e+00> : vector<128xf32>
    %14 = vector.multi_reduction <add>, %13, %cst_11 [1] : vector<128x128xf32> to vector<128xf32>
    %15 = vector.shape_cast %14 : vector<128xf32> to vector<128x1xf32>
    %16 = arith.addf %11, %15 : vector<128x1xf32>
    %c0_12 = arith.constant 0 : index
    %c0_13 = arith.constant 0 : index
    %17 = vector.load %arg12[%c0_12, %c0_13] : memref<128x1xf32, #tpu.memory_space<vmem>>, vector<128x1xf32>
    tpu.vector_store %arg12[%c0_12, %c0_13], %16 {strides = array<i32>} : memref<128x1xf32, #tpu.memory_space<vmem>>, vector<128x1xf32>,
    %c0_14 = arith.constant 0 : index
    %c0_15 = arith.constant 0 : index
    %18 = vector.load %arg10[%c0_14, %c0_15] : memref<128x1xf32, #tpu.memory_space<vmem>>, vector<128x1xf32>
    %cst_16 = arith.constant dense<0xFF800000> : vector<128xf32>
    %19 = vector.multi_reduction <maximumf>, %5, %cst_16 [1] : vector<128x128xf32> to vector<128xf32>
    %20 = vector.shape_cast %19 : vector<128xf32> to vector<128x1xf32>
    %21 = arith.maximumf %18, %20 : vector<128x1xf32>
    %c0_17 = arith.constant 0 : index
    %c0_18 = arith.constant 0 : index
    %22 = vector.load %arg11[%c0_17, %c0_18] : memref<128x1xf32, #tpu.memory_space<vmem>>, vector<128x1xf32>
    %23 = arith.subf %18, %21 : vector<128x1xf32>
    %24 = math.exp %23 : vector<128x1xf32>
    %25 = arith.mulf %22, %24 : vector<128x1xf32>
    %26 = vector.broadcast %21 : vector<128x1xf32> to vector<128x128xf32>
    %27 = arith.subf %5, %26 : vector<128x128xf32>
    %28 = math.exp %27 : vector<128x128xf32>
    %cst_19 = arith.constant dense<0.000000e+00> : vector<128xf32>
    %29 = vector.multi_reduction <add>, %28, %cst_19 [1] : vector<128x128xf32> to vector<128xf32>
    %30 = vector.shape_cast %29 : vector<128xf32> to vector<128x1xf32>
    %31 = arith.addf %25, %30 : vector<128x1xf32>
    %c0_20 = arith.constant 0 : index
    %c0_21 = arith.constant 0 : index
    %32 = vector.load %arg11[%c0_20, %c0_21] : memref<128x1xf32, #tpu.memory_space<vmem>>, vector<128x1xf32>
    tpu.vector_store %arg11[%c0_20, %c0_21], %31 {strides = array<i32>} : memref<128x1xf32, #tpu.memory_space<vmem>>, vector<128x1xf32>,
    %c0_22 = arith.constant 0 : index
    %c0_23 = arith.constant 0 : index
    %33 = vector.load %arg10[%c0_22, %c0_23] : memref<128x1xf32, #tpu.memory_space<vmem>>, vector<128x1xf32>
    tpu.vector_store %arg10[%c0_22, %c0_23], %21 {strides = array<i32>} : memref<128x1xf32, #tpu.memory_space<vmem>>, vector<128x1xf32>,
    %c1_i32 = arith.constant 1 : i32
    %34 = arith.cmpi eq, %arg1, %c1_i32 : i32
    %35 = arith.extui %34 : i1 to i32
    %c0_i32_24 = arith.constant 0 : i32
    %36 = arith.cmpi ne, %35, %c0_i32_24 : i32
    scf.if %36 {
      %c0_25 = arith.constant 0 : index
      %c0_26 = arith.constant 0 : index
      %37 = vector.load %arg10[%c0_25, %c0_26] : memref<128x1xf32, #tpu.memory_space<vmem>>, vector<128x1xf32>
      %c0_27 = arith.constant 0 : index
      %c0_28 = arith.constant 0 : index
      %38 = vector.load %arg11[%c0_27, %c0_28] : memref<128x1xf32, #tpu.memory_space<vmem>>, vector<128x1xf32>
      %cst_29 = arith.constant 0.000000e+00 : f32
      %39 = vector.broadcast %cst_29 : f32 to vector<128x1xf32>
      %40 = arith.subf %39, %37 : vector<128x1xf32>
      %41 = math.exp %40 : vector<128x1xf32>
      %cst_30 = arith.constant 2.400000e+02 : f32
      %42 = vector.broadcast %cst_30 : f32 to vector<128x1xf32>
      %43 = arith.mulf %42, %41 : vector<128x1xf32>
      %44 = arith.subf %38, %43 : vector<128x1xf32>
      %c0_31 = arith.constant 0 : index
      %c0_32 = arith.constant 0 : index
      %45 = vector.load %arg6[%c0_31, %c0_32] : memref<128x1xf32, #tpu.memory_space<vmem>>, vector<128x1xf32>
      %46 = arith.subf %45, %37 : vector<128x1xf32>
      %47 = math.exp %46 : vector<128x1xf32>
      %48 = arith.subf %44, %47 : vector<128x1xf32>
      %cst_33 = arith.constant 0.000000e+00 : f32
      %49 = vector.broadcast %cst_33 : f32 to vector<128x1xf32>
      %50 = arith.maximumf %48, %49 : vector<128x1xf32>
      %c0_34 = arith.constant 0 : index
      %c0_35 = arith.constant 0 : index
      %51 = vector.load %arg12[%c0_34, %c0_35] : memref<128x1xf32, #tpu.memory_space<vmem>>, vector<128x1xf32>
      %c0_36 = arith.constant 0 : index
      %c0_37 = arith.constant 0 : index
      %52 = vector.load %arg7[%c0_36, %c0_37] : memref<128x1xf32, #tpu.memory_space<vmem>>, vector<128x1xf32>
      %53 = arith.subf %51, %52 : vector<128x1xf32>
      %c0_38 = arith.constant 0 : index
      %c0_39 = arith.constant 0 : index
      %54 = vector.load %arg8[%c0_38, %c0_39] : memref<128x1xf32, #tpu.memory_space<vmem>>, vector<128x1xf32>
      %cst_40 = arith.constant 9.99999971E-10 : f32
      %55 = vector.broadcast %cst_40 : f32 to vector<128x1xf32>
      %56 = arith.addf %50, %55 : vector<128x1xf32>
      %57 = math.log %56 : vector<128x1xf32>
      %58 = arith.addf %37, %57 : vector<128x1xf32>
      %59 = arith.mulf %54, %58 : vector<128x1xf32>
      %60 = arith.subf %53, %59 : vector<128x1xf32>
      %cst_41 = arith.constant 0.000000e+00 : f32
      %61 = vector.broadcast %cst_41 : f32 to vector<128x1xf32>
      %62 = arith.cmpf oeq, %54, %61 : vector<128x1xf32>
      %cst_42 = arith.constant 0.000000e+00 : f32
      %63 = vector.broadcast %cst_42 : f32 to vector<128x1xf32>
      %64 = arith.select %62, %63, %60 : vector<128x1xi1>, vector<128x1xf32>
      %cst_43 = arith.constant 9.99999971E-10 : f32
      %65 = vector.broadcast %cst_43 : f32 to vector<128x1xf32>
      %66 = arith.addf %54, %65 : vector<128x1xf32>
      %67 = arith.divf %64, %66 : vector<128x1xf32>
      %cst_44 = arith.constant -1.42857146 : f32
      %68 = vector.broadcast %cst_44 : f32 to vector<128x1xf32>
      %69 = arith.mulf %68, %67 : vector<128x1xf32>
      %c0_45 = arith.constant 0 : index
      %c0_46 = arith.constant 0 : index
      %70 = vector.load %arg9[%c0_45, %c0_46] : memref<128x1xf32, #tpu.memory_space<vmem>>, vector<128x1xf32>
      tpu.vector_store %arg9[%c0_45, %c0_46], %69 {strides = array<i32>} : memref<128x1xf32, #tpu.memory_space<vmem>>, vector<128x1xf32>,
    } else {
    }
    return
  }
  func.func @transform_0(%arg0: i32, %arg1: i32) -> (i32, i32) {
    %c0_i32 = arith.constant 0 : i32
    %c0_i32_0 = arith.constant 0 : i32
    return %arg0, %c0_i32 : i32, i32
  }
  func.func @transform_1(%arg0: i32, %arg1: i32) -> (i32, i32) {
    %c0_i32 = arith.constant 0 : i32
    %c0_i32_0 = arith.constant 0 : i32
    return %arg1, %c0_i32 : i32, i32
  }
  func.func @transform_2(%arg0: i32, %arg1: i32) -> (i32, i32) {
    %c1_i32 = arith.constant 1 : i32
    %c0_i32 = arith.constant 0 : i32
    %0 = arith.cmpi eq, %c1_i32, %c0_i32 : i32
    %c1_i32_0 = arith.constant 1 : i32
    %1 = arith.select %0, %c1_i32_0, %c1_i32 : i32
    %2 = arith.remsi %arg0, %1 : i32
    %c0_i32_1 = arith.constant 0 : i32
    %3 = arith.cmpi ne, %2, %c0_i32_1 : i32
    %c0_i32_2 = arith.constant 0 : i32
    %4 = arith.cmpi slt, %2, %c0_i32_2 : i32
    %c0_i32_3 = arith.constant 0 : i32
    %5 = arith.cmpi slt, %1, %c0_i32_3 : i32
    %6 = arith.xori %4, %5 : i1
    %7 = arith.andi %6, %3 : i1
    %8 = arith.addi %2, %1 : i32
    %9 = arith.select %7, %8, %2 : i32
    %c0_i32_4 = arith.constant 0 : i32
    %c0_i32_5 = arith.constant 0 : i32
    return %9, %c0_i32_4 : i32, i32
  }
  func.func @transform_3(%arg0: i32, %arg1: i32) -> (i32, i32) {
    %c1_i32 = arith.constant 1 : i32
    %c0_i32 = arith.constant 0 : i32
    %0 = arith.cmpi eq, %c1_i32, %c0_i32 : i32
    %c1_i32_0 = arith.constant 1 : i32
    %1 = arith.select %0, %c1_i32_0, %c1_i32 : i32
    %2 = arith.remsi %arg1, %1 : i32
    %c0_i32_1 = arith.constant 0 : i32
    %3 = arith.cmpi ne, %2, %c0_i32_1 : i32
    %c0_i32_2 = arith.constant 0 : i32
    %4 = arith.cmpi slt, %2, %c0_i32_2 : i32
    %c0_i32_3 = arith.constant 0 : i32
    %5 = arith.cmpi slt, %1, %c0_i32_3 : i32
    %6 = arith.xori %4, %5 : i1
    %7 = arith.andi %6, %3 : i1
    %8 = arith.addi %2, %1 : i32
    %9 = arith.select %7, %8, %2 : i32
    %c0_i32_4 = arith.constant 0 : i32
    %c0_i32_5 = arith.constant 0 : i32
    return %c0_i32_4, %9 : i32, i32
  }
  func.func @transform_4(%arg0: i32, %arg1: i32) -> (i32, i32) {
    %c0_i32 = arith.constant 0 : i32
    %c0_i32_0 = arith.constant 0 : i32
    return %arg0, %c0_i32 : i32, i32
  }
  func.func @transform_5(%arg0: i32, %arg1: i32) -> (i32, i32) {
    %c0_i32 = arith.constant 0 : i32
    %c0_i32_0 = arith.constant 0 : i32
    return %arg0, %c0_i32 : i32, i32
  }
  func.func @transform_6(%arg0: i32, %arg1: i32) -> (i32, i32) {
    %c0_i32 = arith.constant 0 : i32
    %c0_i32_0 = arith.constant 0 : i32
    return %arg0, %c0_i32 : i32, i32
  }
  func.func @transform_7(%arg0: i32, %arg1: i32) -> (i32, i32) {
    %c0_i32 = arith.constant 0 : i32
    %c0_i32_0 = arith.constant 0 : i32
    return %arg0, %c0_i32 : i32, i32
  }
}

</mosaic_0001>

<llo_original>
// kernel: tpu_custom_call.1
$region0: #{tpu_custom_call.1}
  #allocation0 [shape = 'u32[]', space=smem, size = 0x4, offset = 0x4, fixed_abs, tag = 'smem constant byte address 0x4 - core index']
  #allocation1 [shape = 'u32[144,128]{1,0:T(1,128)}', space=vmem, size = 0x12000, scoped, tag = 'internal scratch']
  #allocation2 [shape = 'f32[128,1]{1,0:T(8,128)}', space=vmem, size = 0x10000, scoped, tag = 'scratch operand']
  #allocation3 [shape = 'f32[128,1]{1,0:T(8,128)}', space=vmem, size = 0x10000, scoped, tag = 'scratch operand']
  #allocation4 [shape = 'f32[128,1]{1,0:T(8,128)}', space=vmem, size = 0x10000, scoped, tag = 'scratch operand']
  %s0 = inlined_call_operand.vmem [shape: f32[256,128], index: 0, kind: input, shape index: {}]
  %s1 = inlined_call_operand.vmem [shape: f32[256,128], index: 1, kind: input, shape index: {}]
  %s2 = inlined_call_operand.vmem [shape: s32[128,1], index: 2, kind: input, shape index: {}]
  %s3 = inlined_call_operand.vmem [shape: s32[1,128], index: 3, kind: input, shape index: {}]
  %s4 = inlined_call_operand.vmem [shape: f32[256,1], index: 4, kind: input, shape index: {}]
  %s5 = inlined_call_operand.vmem [shape: f32[256,1], index: 5, kind: input, shape index: {}]
  %s6 = inlined_call_operand.vmem [shape: f32[256,1], index: 6, kind: input, shape index: {}]
  %s7 = inlined_call_operand.vmem [shape: f32[256,1], index: 7, kind: output, shape index: {}]
  %s8 = sld [smem:[#allocation0]]
  $region69: #{tpu_custom_call.1} parent=0
    _
  %s10 = ssub.s32 1, %s8
  %s11 = scalar_select 0, %s10, %s8
  loop: start=0, step=1, limit=6
  $region2: #{tpu_custom_call.1} parent=0 // loop_pre_header
    _
  $region3: #{tpu_custom_call.1} parent=0 // loop_header
    %s13 = sphi 0, %s17
    %p14 = scmp.ge.s32.totalorder %s13, 6
    %s20 = sphi 0, %s32
    %s21 = sphi 0, %s28
    %s22 = sphi 0, %s20
    %s23 = sphi 0, %s21
    %s24 = sphi 0, %s22
    %s25 = sphi 0, %s23
    %s35 = sphi 0, %s37
    %s38 = sphi 0, %s35
    %s39 = sphi 0, %s38
    %s55 = sphi 0, %s39
    %s61 = sphi 0, %s63
    %s64 = sphi 0, %s61
    %s65 = sphi 0, %s64
    %s81 = sphi 0, %s65
    %s85 = sphi 0, %s85
    %s87 = sphi 0, %s85
    %s88 = sphi 0, %s87
    %s102 = sphi 0, %s88
    %s106 = sphi 0, %s106
    %s108 = sphi 0, %s106
    %s109 = sphi 0, %s108
    %s123 = sphi 0, %s109
    %s129 = sphi 0, %s131
    %s132 = sphi 0, %s129
    %s133 = sphi 0, %s132
    %s149 = sphi 0, %s133
    %s155 = sphi 0, %s157
    %s158 = sphi 0, %s155
    %s159 = sphi 0, %s158
    %s175 = sphi 0, %s159
    %s181 = sphi 0, %s183
    %s184 = sphi 0, %s181
    %s185 = sphi 0, %s184
    %s201 = sphi 0, %s185
    %s207 = sphi 0, %s209
    %s210 = sphi 0, %s207
    %s211 = sphi 0, %s210
    %s227 = sphi 0, %s211
  $region4: #{tpu_custom_call.1} parent=0 // loop_header_branch
    %16 = sbr.rel (%p14) target = $region8
  $region5: #{tpu_custom_call.1} parent=0 // loop_body
    %s18 = ssub.s32 %s13, 1
    %s19 = ssub.s32 %s13, 2
    %s26 = sadd.s32 1, %s21
    %p27 = scmp.ge.s32.totalorder %s26, 2
    %s28 = scalar_select %p27, 0, %s26
    %s29 = sadd.s32 1, %s20
    %s30 = scalar_select %p27, %s29, %s20
    %p31 = scmp.ge.s32.totalorder %s30, 2
    %s32 = scalar_select %p31, 0, %s30
    %s33 = ssub.s32 %s20, %s32
    %p34 = scmp.eq.s32.totalorder %s33, 0
    %s36 = sadd.s32 %s35, 1
    %s37 = scalar_select %p34, %s35, %s36
    %p40 = pneg %p34
    %p41 = scmp.eq.s32.totalorder %s13, 3
    %p42 = por %p40, %p41
    %p43 = scmp.ne.s32.totalorder %s35, %s38
    %p44 = scmp.eq.s32.totalorder %s13, 0
    %p45 = por %p43, %p44
    %p46 = scmp.ne.s32.totalorder %s35, %s38
    %p47 = scmp.eq.s32.totalorder %s18, 3
    %p48 = por %p46, %p47
    %p49 = scmp.ne.s32.totalorder %s38, %s39
    %p50 = scmp.eq.s32.totalorder %s18, 0
    %p51 = por %p49, %p50
    %p52 = scmp.ne.s32.totalorder %s38, %s39
    %p53 = scmp.eq.s32.totalorder %s19, 3
    %p54 = por %p52, %p53
    %p56 = scmp.ne.s32.totalorder %s39, %s55
    %p57 = scmp.eq.s32.totalorder %s19, 0
    %p58 = por %p56, %p57
    %s59 = ssub.s32 %s21, %s28
    %p60 = scmp.eq.s32.totalorder %s59, 0
    %s62 = sadd.s32 %s61, 1
    %s63 = scalar_select %p60, %s61, %s62
    %p66 = pneg %p60
    %p67 = scmp.eq.s32.totalorder %s13, 3
    %p68 = por %p66, %p67
    %p69 = scmp.ne.s32.totalorder %s61, %s64
    %p70 = scmp.eq.s32.totalorder %s13, 0
    %p71 = por %p69, %p70
    %p72 = scmp.ne.s32.totalorder %s61, %s64
    %p73 = scmp.eq.s32.totalorder %s18, 3
    %p74 = por %p72, %p73
    %p75 = scmp.ne.s32.totalorder %s64, %s65
    %p76 = scmp.eq.s32.totalorder %s18, 0
    %p77 = por %p75, %p76
    %p78 = scmp.ne.s32.totalorder %s64, %s65
    %p79 = scmp.eq.s32.totalorder %s19, 3
    %p80 = por %p78, %p79
    %p82 = scmp.ne.s32.totalorder %s65, %s81
    %p83 = scmp.eq.s32.totalorder %s19, 0
    %p84 = por %p82, %p83
    %s86 = sadd.s32 %s85, 1
    %p89 = scmp.eq.s32.totalorder %s13, 3
    %p90 = scmp.ne.s32.totalorder %s85, %s87
    %p91 = scmp.eq.s32.totalorder %s13, 0
    %p92 = por %p90, %p91
    %p93 = scmp.ne.s32.totalorder %s85, %s87
    %p94 = scmp.eq.s32.totalorder %s18, 3
    %p95 = por %p93, %p94
    %p96 = scmp.ne.s32.totalorder %s87, %s88
    %p97 = scmp.eq.s32.totalorder %s18, 0
    %p98 = por %p96, %p97
    %p99 = scmp.ne.s32.totalorder %s87, %s88
    %p100 = scmp.eq.s32.totalorder %s19, 3
    %p101 = por %p99, %p100
    %p103 = scmp.ne.s32.totalorder %s88, %s102
    %p104 = scmp.eq.s32.totalorder %s19, 0
    %p105 = por %p103, %p104
    %s107 = sadd.s32 %s106, 1
    %p110 = scmp.eq.s32.totalorder %s13, 3
    %p111 = scmp.ne.s32.totalorder %s106, %s108
    %p112 = scmp.eq.s32.totalorder %s13, 0
    %p113 = por %p111, %p112
    %p114 = scmp.ne.s32.totalorder %s106, %s108
    %p115 = scmp.eq.s32.totalorder %s18, 3
    %p116 = por %p114, %p115
    %p117 = scmp.ne.s32.totalorder %s108, %s109
    %p118 = scmp.eq.s32.totalorder %s18, 0
    %p119 = por %p117, %p118
    %p120 = scmp.ne.s32.totalorder %s108, %s109
    %p121 = scmp.eq.s32.totalorder %s19, 3
    %p122 = por %p120, %p121
    %p124 = scmp.ne.s32.totalorder %s109, %s123
    %p125 = scmp.eq.s32.totalorder %s19, 0
    %p126 = por %p124, %p125
    %s127 = ssub.s32 %s20, %s32
    %p128 = scmp.eq.s32.totalorder %s127, 0
    %s130 = sadd.s32 %s129, 1
    %s131 = scalar_select %p128, %s129, %s130
    %p134 = pneg %p128
    %p135 = scmp.eq.s32.totalorder %s13, 3
    %p136 = por %p134, %p135
    %p137 = scmp.ne.s32.totalorder %s129, %s132
    %p138 = scmp.eq.s32.totalorder %s13, 0
    %p139 = por %p137, %p138
    %p140 = scmp.ne.s32.totalorder %s129, %s132
    %p141 = scmp.eq.s32.totalorder %s18, 3
    %p142 = por %p140, %p141
    %p143 = scmp.ne.s32.totalorder %s132, %s133
    %p144 = scmp.eq.s32.totalorder %s18, 0
    %p145 = por %p143, %p144
    %p146 = scmp.ne.s32.totalorder %s132, %s133
    %p147 = scmp.eq.s32.totalorder %s19, 3
    %p148 = por %p146, %p147
    %p150 = scmp.ne.s32.totalorder %s133, %s149
    %p151 = scmp.eq.s32.totalorder %s19, 0
    %p152 = por %p150, %p151
    %s153 = ssub.s32 %s20, %s32
    %p154 = scmp.eq.s32.totalorder %s153, 0
    %s156 = sadd.s32 %s155, 1
    %s157 = scalar_select %p154, %s155, %s156
    %p160 = pneg %p154
    %p161 = scmp.eq.s32.totalorder %s13, 3
    %p162 = por %p160, %p161
    %p163 = scmp.ne.s32.totalorder %s155, %s158
    %p164 = scmp.eq.s32.totalorder %s13, 0
    %p165 = por %p163, %p164
    %p166 = scmp.ne.s32.totalorder %s155, %s158
    %p167 = scmp.eq.s32.totalorder %s18, 3
    %p168 = por %p166, %p167
    %p169 = scmp.ne.s32.totalorder %s158, %s159
    %p170 = scmp.eq.s32.totalorder %s18, 0
    %p171 = por %p169, %p170
    %p172 = scmp.ne.s32.totalorder %s158, %s159
    %p173 = scmp.eq.s32.totalorder %s19, 3
    %p174 = por %p172, %p173
    %p176 = scmp.ne.s32.totalorder %s159, %s175
    %p177 = scmp.eq.s32.totalorder %s19, 0
    %p178 = por %p176, %p177
    %s179 = ssub.s32 %s20, %s32
    %p180 = scmp.eq.s32.totalorder %s179, 0
    %s182 = sadd.s32 %s181, 1
    %s183 = scalar_select %p180, %s181, %s182
    %p186 = pneg %p180
    %p187 = scmp.eq.s32.totalorder %s13, 3
    %p188 = por %p186, %p187
    %p189 = scmp.ne.s32.totalorder %s181, %s184
    %p190 = scmp.eq.s32.totalorder %s13, 0
    %p191 = por %p189, %p190
    %p192 = scmp.ne.s32.totalorder %s181, %s184
    %p193 = scmp.eq.s32.totalorder %s18, 3
    %p194 = por %p192, %p193
    %p195 = scmp.ne.s32.totalorder %s184, %s185
    %p196 = scmp.eq.s32.totalorder %s18, 0
    %p197 = por %p195, %p196
    %p198 = scmp.ne.s32.totalorder %s184, %s185
    %p199 = scmp.eq.s32.totalorder %s19, 3
    %p200 = por %p198, %p199
    %p202 = scmp.ne.s32.totalorder %s185, %s201
    %p203 = scmp.eq.s32.totalorder %s19, 0
    %p204 = por %p202, %p203
    %s205 = ssub.s32 %s20, %s32
    %p206 = scmp.eq.s32.totalorder %s205, 0
    %s208 = sadd.s32 %s207, 1
    %s209 = scalar_select %p206, %s207, %s208
    %p212 = pneg %p206
    %p213 = scmp.eq.s32.totalorder %s13, 3
    %p214 = por %p212, %p213
    %p215 = scmp.ne.s32.totalorder %s207, %s210
    %p216 = scmp.eq.s32.totalorder %s13, 0
    %p217 = por %p215, %p216
    %p218 = scmp.ne.s32.totalorder %s207, %s210
    %p219 = scmp.eq.s32.totalorder %s18, 3
    %p220 = por %p218, %p219
    %p221 = scmp.ne.s32.totalorder %s210, %s211
    %p222 = scmp.eq.s32.totalorder %s18, 0
    %p223 = por %p221, %p222
    %p224 = scmp.ne.s32.totalorder %s210, %s211
    %p225 = scmp.eq.s32.totalorder %s19, 3
    %p226 = por %p224, %p225
    %p228 = scmp.ne.s32.totalorder %s211, %s227
    %p229 = scmp.eq.s32.totalorder %s19, 0
    %p230 = por %p228, %p229
    %p231 = scmp.le.s32.totalorder 1, %s13
    %p232 = scmp.lt.s32.totalorder %s13, 5
    %p233 = pnand %p231, %p232
    %p234 = pneg %p233
    // Predicated region
    $region9: #{tpu_custom_call.1} parent=5 // pred_check
      _
    $region10: #{tpu_custom_call.1} parent=5 // pred_check_branch
      %236 = sbr.rel (%p233) target = $region12
    $region11: #{tpu_custom_call.1} parent=5 // pred_region
      %s237 = ssub.s32 %s13, 1
      // Predicated region
      $region13: #{tpu_custom_call.1} parent=11 // pred_check
        %p238 = pneg %p98
      $region14: #{tpu_custom_call.1} parent=11 // pred_check_branch
        %240 = sbr.rel (%p238) target = $region16
      $region15: #{tpu_custom_call.1} parent=11 // pred_region
        _
      $region16: #{tpu_custom_call.1} parent=11 // pred_fallthru
        _
      // Predicated region
      $region17: #{tpu_custom_call.1} parent=11 // pred_check
        %p241 = pneg %p119
      $region18: #{tpu_custom_call.1} parent=11 // pred_check_branch
        %243 = sbr.rel (%p241) target = $region20
      $region19: #{tpu_custom_call.1} parent=11 // pred_region
        _
      $region20: #{tpu_custom_call.1} parent=11 // pred_fallthru
        _
    $region12: #{tpu_custom_call.1} parent=5 // pred_fallthru
      _
    %p244 = scmp.lt.s32.totalorder %s13, 4
    // Predicated region
    $region21: #{tpu_custom_call.1} parent=5 // pred_check
      %p245 = pneg %p244
    $region22: #{tpu_custom_call.1} parent=5 // pred_check_branch
      %247 = sbr.rel (%p245) target = $region24
    $region23: #{tpu_custom_call.1} parent=5 // pred_region
      // Predicated region
      $region25: #{tpu_custom_call.1} parent=23 // pred_check
        %p248 = pneg %p45
      $region26: #{tpu_custom_call.1} parent=23 // pred_check_branch
        %250 = sbr.rel (%p248) target = $region28
      $region27: #{tpu_custom_call.1} parent=23 // pred_region
        %s251 = smul.u32 16, %s20
        %p252 = scmp.lt.s32.totalorder %s251, 31
        %s253 = scalar_select %p252, %s251, 31
        %s254 = smul.addr %s253, 8
        %s255 = scalar_lea.vmem %s0, %s254
        %s256 = smul.u32 16, %s20
      $region28: #{tpu_custom_call.1} parent=23 // pred_fallthru
        _
      // Predicated region
      $region29: #{tpu_custom_call.1} parent=23 // pred_check
        %p257 = pneg %p71
      $region30: #{tpu_custom_call.1} parent=23 // pred_check_branch
        %259 = sbr.rel (%p257) target = $region32
      $region31: #{tpu_custom_call.1} parent=23 // pred_region
        %s260 = smul.u32 16, %s21
        %p261 = scmp.lt.s32.totalorder %s260, 31
        %s262 = scalar_select %p261, %s260, 31
        %s263 = smul.addr %s262, 8
        %s264 = scalar_lea.vmem %s1, %s263
        %s265 = smul.u32 16, %s21
      $region32: #{tpu_custom_call.1} parent=23 // pred_fallthru
        _
      // Predicated region
      $region33: #{tpu_custom_call.1} parent=23 // pred_check
        %p266 = pneg %p139
      $region34: #{tpu_custom_call.1} parent=23 // pred_check_branch
        %268 = sbr.rel (%p266) target = $region36
      $region35: #{tpu_custom_call.1} parent=23 // pred_region
        %s269 = smul.u32 16, %s20
        %p270 = scmp.lt.s32.totalorder %s269, 31
        %s271 = scalar_select %p270, %s269, 31
        %s272 = smul.addr %s271, 8
        %s273 = scalar_lea.vmem %s4, %s272
        %s274 = smul.u32 16, %s20
      $region36: #{tpu_custom_call.1} parent=23 // pred_fallthru
        _
      // Predicated region
      $region37: #{tpu_custom_call.1} parent=23 // pred_check
        %p275 = pneg %p165
      $region38: #{tpu_custom_call.1} parent=23 // pred_check_branch
        %277 = sbr.rel (%p275) target = $region40
      $region39: #{tpu_custom_call.1} parent=23 // pred_region
        %s278 = smul.u32 16, %s20
        %p279 = scmp.lt.s32.totalorder %s278, 31
        %s280 = scalar_select %p279, %s278, 31
        %s281 = smul.addr %s280, 8
        %s282 = scalar_lea.vmem %s5, %s281
        %s283 = smul.u32 16, %s20
      $region40: #{tpu_custom_call.1} parent=23 // pred_fallthru
        _
      // Predicated region
      $region41: #{tpu_custom_call.1} parent=23 // pred_check
        %p284 = pneg %p191
      $region42: #{tpu_custom_call.1} parent=23 // pred_check_branch
        %286 = sbr.rel (%p284) target = $region44
      $region43: #{tpu_custom_call.1} parent=23 // pred_region
        %s287 = smul.u32 16, %s20
        %p288 = scmp.lt.s32.totalorder %s287, 31
        %s289 = scalar_select %p288, %s287, 31
        %s290 = smul.addr %s289, 8
        %s291 = scalar_lea.vmem %s6, %s290
        %s292 = smul.u32 16, %s20
      $region44: #{tpu_custom_call.1} parent=23 // pred_fallthru
        _
    $region24: #{tpu_custom_call.1} parent=5 // pred_fallthru
      _
    %p293 = scmp.le.s32.totalorder 1, %s13
    %p294 = scmp.lt.s32.totalorder %s13, 5
    %p295 = pnand %p293, %p294
    %p296 = pneg %p295
    // Predicated region
    $region45: #{tpu_custom_call.1} parent=5 // pred_check
      _
    $region46: #{tpu_custom_call.1} parent=5 // pred_check_branch
      %298 = sbr.rel (%p295) target = $region48
    $region47: #{tpu_custom_call.1} parent=5 // pred_region
      %s299 = ssub.s32 %s13, 1
      %s300 = smul.u32 16, %s22
      %p301 = scmp.lt.s32.totalorder %s300, 31
      %s302 = scalar_select %p301, %s300, 31
      %s303 = smul.addr %s302, 8
      %s304 = scalar_lea.vmem %s0, %s303
      %p305 = pneg %p51
      %p306 = pneg %p48
      %s307 = smul.u32 16, %s23
      %p308 = scmp.lt.s32.totalorder %s307, 31
      %s309 = scalar_select %p308, %s307, 31
      %s310 = smul.addr %s309, 8
      %s311 = scalar_lea.vmem %s1, %s310
      %p312 = pneg %p77
      %p313 = pneg %p74
      %p314 = pneg %p98
      %p315 = pneg %p95
      %p316 = pneg %p119
      %p317 = pneg %p116
      %s318 = smul.u32 16, %s22
      %p319 = scmp.lt.s32.totalorder %s318, 31
      %s320 = scalar_select %p319, %s318, 31
      %s321 = smul.addr %s320, 8
      %s322 = scalar_lea.vmem %s4, %s321
      %p323 = pneg %p145
      %p324 = pneg %p142
      %s325 = smul.u32 16, %s22
      %p326 = scmp.lt.s32.totalorder %s325, 31
      %s327 = scalar_select %p326, %s325, 31
      %s328 = smul.addr %s327, 8
      %s329 = scalar_lea.vmem %s5, %s328
      %p330 = pneg %p171
      %p331 = pneg %p168
      %s332 = smul.u32 16, %s22
      %p333 = scmp.lt.s32.totalorder %s332, 31
      %s334 = scalar_select %p333, %s332, 31
      %s335 = smul.addr %s334, 8
      %s336 = scalar_lea.vmem %s6, %s335
      %p337 = pneg %p197
      %p338 = pneg %p194
      %p339 = pneg %p223
      %p340 = pneg %p220
      %s341 = smul.u32 16, %s22
      %p342 = scmp.lt.s32.totalorder %s341, 31
      %s343 = scalar_select %p342, %s341, 31
      %s344 = smul.addr %s343, 8
      %s345 = scalar_lea.vmem %s7, %s344
      %s346 = smul.u32 16, %s22
      %p347 = scmp.lt.s32.totalorder %s346, 31
      %s348 = scalar_select %p347, %s346, 31
      %s349 = smul.addr %s348, 8
      %s350 = scalar_lea.vmem %s0, %s349
      %s351 = smul.u32 16, %s22
      %s352 = smul.u32 16, %s23
      %p353 = scmp.lt.s32.totalorder %s352, 31
      %s354 = scalar_select %p353, %s352, 31
      %s355 = smul.addr %s354, 8
      %s356 = scalar_lea.vmem %s1, %s355
      %s357 = smul.u32 16, %s23
      %s358 = smul.u32 16, %s22
      %p359 = scmp.lt.s32.totalorder %s358, 31
      %s360 = scalar_select %p359, %s358, 31
      %s361 = smul.addr %s360, 8
      %s362 = scalar_lea.vmem %s4, %s361
      %s363 = smul.u32 16, %s22
      %s364 = smul.u32 16, %s22
      %p365 = scmp.lt.s32.totalorder %s364, 31
      %s366 = scalar_select %p365, %s364, 31
      %s367 = smul.addr %s366, 8
      %s368 = scalar_lea.vmem %s5, %s367
      %s369 = smul.u32 16, %s22
      %s370 = smul.u32 16, %s22
      %p371 = scmp.lt.s32.totalorder %s370, 31
      %s372 = scalar_select %p371, %s370, 31
      %s373 = smul.addr %s372, 8
      %s374 = scalar_lea.vmem %s6, %s373
      %s375 = smul.u32 16, %s22
      %s376 = smul.u32 16, %s22
      %p377 = scmp.lt.s32.totalorder %s376, 31
      %s378 = scalar_select %p377, %s376, 31
      %s379 = smul.addr %s378, 8
      %s380 = scalar_lea.vmem %s7, %s379
      %s381 = smul.u32 16, %s22
      %p382 = scmp.eq.s32.totalorder %s23, 0
      // Predicated region
      $region49: #{tpu_custom_call.1} parent=47 // pred_check
        %p383 = pneg %p382
      $region50: #{tpu_custom_call.1} parent=47 // pred_check_branch
        %385 = sbr.rel (%p383) target = $region52
      $region51: #{tpu_custom_call.1} parent=47 // pred_region
        %vm386 = vcmask 7168
        %387 = vst.msk [vmem:[#allocation2] sm:$0xff] %vm386, -inf
        %388 = vst.msk [vmem:[#allocation2 + $0x8] sm:$0xff] %vm386, -inf
        %389 = vst.msk [vmem:[#allocation2 + $0x10] sm:$0xff] %vm386, -inf
        %390 = vst.msk [vmem:[#allocation2 + $0x18] sm:$0xff] %vm386, -inf
        %391 = vst.msk [vmem:[#allocation2 + $0x20] sm:$0xff] %vm386, -inf
        %392 = vst.msk [vmem:[#allocation2 + $0x28] sm:$0xff] %vm386, -inf
        %393 = vst.msk [vmem:[#allocation2 + $0x30] sm:$0xff] %vm386, -inf
        %394 = vst.msk [vmem:[#allocation2 + $0x38] sm:$0xff] %vm386, -inf
        %395 = vst.msk [vmem:[#allocation2 + $0x40] sm:$0xff] %vm386, -inf
        %396 = vst.msk [vmem:[#allocation2 + $0x48] sm:$0xff] %vm386, -inf
        %397 = vst.msk [vmem:[#allocation2 + $0x50] sm:$0xff] %vm386, -inf
        %398 = vst.msk [vmem:[#allocation2 + $0x58] sm:$0xff] %vm386, -inf
        %399 = vst.msk [vmem:[#allocation2 + $0x60] sm:$0xff] %vm386, -inf
        %400 = vst.msk [vmem:[#allocation2 + $0x68] sm:$0xff] %vm386, -inf
        %401 = vst.msk [vmem:[#allocation2 + $0x70] sm:$0xff] %vm386, -inf
        %402 = vst.msk [vmem:[#allocation2 + $0x78] sm:$0xff] %vm386, -inf
        %403 = vst.msk [vmem:[#allocation3] sm:$0xff] %vm386, 0.0
        %404 = vst.msk [vmem:[#allocation3 + $0x8] sm:$0xff] %vm386, 0.0
        %405 = vst.msk [vmem:[#allocation3 + $0x10] sm:$0xff] %vm386, 0.0
        %406 = vst.msk [vmem:[#allocation3 + $0x18] sm:$0xff] %vm386, 0.0
        %407 = vst.msk [vmem:[#allocation3 + $0x20] sm:$0xff] %vm386, 0.0
        %408 = vst.msk [vmem:[#allocation3 + $0x28] sm:$0xff] %vm386, 0.0
        %409 = vst.msk [vmem:[#allocation3 + $0x30] sm:$0xff] %vm386, 0.0
        %410 = vst.msk [vmem:[#allocation3 + $0x38] sm:$0xff] %vm386, 0.0
        %411 = vst.msk [vmem:[#allocation3 + $0x40] sm:$0xff] %vm386, 0.0
        %412 = vst.msk [vmem:[#allocation3 + $0x48] sm:$0xff] %vm386, 0.0
        %413 = vst.msk [vmem:[#allocation3 + $0x50] sm:$0xff] %vm386, 0.0
        %414 = vst.msk [vmem:[#allocation3 + $0x58] sm:$0xff] %vm386, 0.0
        %415 = vst.msk [vmem:[#allocation3 + $0x60] sm:$0xff] %vm386, 0.0
        %416 = vst.msk [vmem:[#allocation3 + $0x68] sm:$0xff] %vm386, 0.0
        %417 = vst.msk [vmem:[#allocation3 + $0x70] sm:$0xff] %vm386, 0.0
        %418 = vst.msk [vmem:[#allocation3 + $0x78] sm:$0xff] %vm386, 0.0
        %419 = vst.msk [vmem:[#allocation4] sm:$0xff] %vm386, 0.0
        %420 = vst.msk [vmem:[#allocation4 + $0x8] sm:$0xff] %vm386, 0.0
        %421 = vst.msk [vmem:[#allocation4 + $0x10] sm:$0xff] %vm386, 0.0
        %422 = vst.msk [vmem:[#allocation4 + $0x18] sm:$0xff] %vm386, 0.0
        %423 = vst.msk [vmem:[#allocation4 + $0x20] sm:$0xff] %vm386, 0.0
        %424 = vst.msk [vmem:[#allocation4 + $0x28] sm:$0xff] %vm386, 0.0
        %425 = vst.msk [vmem:[#allocation4 + $0x30] sm:$0xff] %vm386, 0.0
        %426 = vst.msk [vmem:[#allocation4 + $0x38] sm:$0xff] %vm386, 0.0
        %427 = vst.msk [vmem:[#allocation4 + $0x40] sm:$0xff] %vm386, 0.0
        %428 = vst.msk [vmem:[#allocation4 + $0x48] sm:$0xff] %vm386, 0.0
        %429 = vst.msk [vmem:[#allocation4 + $0x50] sm:$0xff] %vm386, 0.0
        %430 = vst.msk [vmem:[#allocation4 + $0x58] sm:$0xff] %vm386, 0.0
        %431 = vst.msk [vmem:[#allocation4 + $0x60] sm:$0xff] %vm386, 0.0
        %432 = vst.msk [vmem:[#allocation4 + $0x68] sm:$0xff] %vm386, 0.0
        %433 = vst.msk [vmem:[#allocation4 + $0x70] sm:$0xff] %vm386, 0.0
        %434 = vst.msk [vmem:[#allocation4 + $0x78] sm:$0xff] %vm386, 0.0
      $region52: #{tpu_custom_call.1} parent=47 // pred_fallthru
        _
      %v435 = vld [vmem:[%s350] sm:$0xff]
      %v436 = vld [vmem:[%s350 + $0x8] sm:$0xff]
      %v437 = vld [vmem:[%s350 + $0x10] sm:$0xff]
      %v438 = vld [vmem:[%s350 + $0x18] sm:$0xff]
      %v439 = vld [vmem:[%s350 + $0x20] sm:$0xff]
      %v440 = vld [vmem:[%s350 + $0x28] sm:$0xff]
      %v441 = vld [vmem:[%s350 + $0x30] sm:$0xff]
      %v442 = vld [vmem:[%s350 + $0x38] sm:$0xff]
      %v443 = vld [vmem:[%s350 + $0x40] sm:$0xff]
      %v444 = vld [vmem:[%s350 + $0x48] sm:$0xff]
      %v445 = vld [vmem:[%s350 + $0x50] sm:$0xff]
      %v446 = vld [vmem:[%s350 + $0x58] sm:$0xff]
      %v447 = vld [vmem:[%s350 + $0x60] sm:$0xff]
      %v448 = vld [vmem:[%s350 + $0x68] sm:$0xff]
      %v449 = vld [vmem:[%s350 + $0x70] sm:$0xff]
      %v450 = vld [vmem:[%s350 + $0x78] sm:$0xff]
      %v451 = vld [vmem:[%s356] sm:$0xff]
      %v452 = vld [vmem:[%s356 + $0x8] sm:$0xff]
      %v453 = vld [vmem:[%s356 + $0x10] sm:$0xff]
      %v454 = vld [vmem:[%s356 + $0x18] sm:$0xff]
      %v455 = vld [vmem:[%s356 + $0x20] sm:$0xff]
      %v456 = vld [vmem:[%s356 + $0x28] sm:$0xff]
      %v457 = vld [vmem:[%s356 + $0x30] sm:$0xff]
      %v458 = vld [vmem:[%s356 + $0x38] sm:$0xff]
      %v459 = vld [vmem:[%s356 + $0x40] sm:$0xff]
      %v460 = vld [vmem:[%s356 + $0x48] sm:$0xff]
      %v461 = vld [vmem:[%s356 + $0x50] sm:$0xff]
      %v462 = vld [vmem:[%s356 + $0x58] sm:$0xff]
      %v463 = vld [vmem:[%s356 + $0x60] sm:$0xff]
      %v464 = vld [vmem:[%s356 + $0x68] sm:$0xff]
      %v465 = vld [vmem:[%s356 + $0x70] sm:$0xff]
      %v466 = vld [vmem:[%s356 + $0x78] sm:$0xff]
      %467 = vmatprep.subr.mxu0 0.0
      %468 = vmatpush1.xpose.msra.mxu0 %v451
      %469 = vmatprep.subr.mxu0 0.0
      %470 = vmatpush1.xpose.msra.mxu0 %v452
      %471 = vmatprep.subr.mxu0 0.0
      %472 = vmatpush1.xpose.msra.mxu0 %v453
      %473 = vmatprep.subr.mxu0 0.0
      %474 = vmatpush1.xpose.msra.mxu0 %v454
      %475 = vmatprep.subr.mxu0 0.0
      %476 = vmatpush1.xpose.msra.mxu0 %v455
      %477 = vmatprep.subr.mxu0 0.0
      %478 = vmatpush1.xpose.msra.mxu0 %v456
      %479 = vmatprep.subr.mxu0 0.0
      %480 = vmatpush1.xpose.msra.mxu0 %v457
      %481 = vmatprep.subr.mxu0 0.0
      %482 = vmatpush1.xpose.msra.mxu0 %v458
      %483 = vmatprep.subr.mxu0 0.0
      %484 = vmatpush1.xpose.msra.mxu0 %v459
      %485 = vmatprep.subr.mxu0 0.0
      %486 = vmatpush1.xpose.msra.mxu0 %v460
      %487 = vmatprep.subr.mxu0 0.0
      %488 = vmatpush1.xpose.msra.mxu0 %v461
      %489 = vmatprep.subr.mxu0 0.0
      %490 = vmatpush1.xpose.msra.mxu0 %v462
      %491 = vmatprep.subr.mxu0 0.0
      %492 = vmatpush1.xpose.msra.mxu0 %v463
      %493 = vmatprep.subr.mxu0 0.0
      %494 = vmatpush1.xpose.msra.mxu0 %v464
      %495 = vmatprep.subr.mxu0 0.0
      %496 = vmatpush1.xpose.msra.mxu0 %v465
      %497 = vmatprep.subr.mxu0 0.0
      %498 = vmatpush1.xpose.msra.mxu0 %v466
      %499 = vmatprep.subr.mxu0 0.0
      %500 = vmatpush1.xpose.msra.mxu0 0.0
      %501 = vmatprep.subr.mxu0 0.0
      %502 = vmatpush1.xpose.msra.mxu0 0.0
      %503 = vmatprep.subr.mxu0 0.0
      %504 = vmatpush1.xpose.msra.mxu0 0.0
      %505 = vmatprep.subr.mxu0 0.0
      %506 = vmatpush1.xpose.msra.mxu0 0.0
      %507 = vmatprep.subr.mxu0 0.0
      %508 = vmatpush1.xpose.msra.mxu0 0.0
      %509 = vmatprep.subr.mxu0 0.0
      %510 = vmatpush1.xpose.msra.mxu0 0.0
      %511 = vmatprep.subr.mxu0 0.0
      %512 = vmatpush1.xpose.msra.mxu0 0.0
      %513 = vmatprep.subr.mxu0 0.0
      %514 = vmatpush1.xpose.msra.mxu0 0.0
      %515 = vmatprep.subr.mxu0 0.0
      %516 = vmatpush1.xpose.msra.mxu0 0.0
      %517 = vmatprep.subr.mxu0 0.0
      %518 = vmatpush1.xpose.msra.mxu0 0.0
      %519 = vmatprep.subr.mxu0 0.0
      %520 = vmatpush1.xpose.msra.mxu0 0.0
      %521 = vmatprep.subr.mxu0 0.0
      %522 = vmatpush1.xpose.msra.mxu0 0.0
      %523 = vmatprep.subr.mxu0 0.0
      %524 = vmatpush1.xpose.msra.mxu0 0.0
      %525 = vmatprep.subr.mxu0 0.0
      %526 = vmatpush1.xpose.msra.mxu0 0.0
      %527 = vmatprep.subr.mxu0 0.0
      %528 = vmatpush1.xpose.msra.mxu0 0.0
      %529 = vmatprep.subr.mxu0 0.0
      %530 = vmatpush1.xpose.msra.mxu0 0.0
      %531 = vmatprep.mubr.f32.mxu0 0.0
      %532 = vmatmul.mubr.f32.gmra.mrb[0].mxu0 %v435
      %v533 = vpop.f32.mrb[0].mxu0
      %v534 = vadd.f32 0.0, %v533
      %v535 = vpop.f32.mrb[0].mxu0
      %536 = vmatprep.mubr.f32.mxu0 0.0
      %537 = vmatmul.mubr.f32.gmra.mrb[0].mxu0 %v436
      %v538 = vpop.f32.mrb[0].mxu0
      %v539 = vadd.f32 0.0, %v538
      %v540 = vpop.f32.mrb[0].mxu0
      %541 = vmatprep.mubr.f32.mxu0 0.0
      %542 = vmatmul.mubr.f32.gmra.mrb[0].mxu0 %v437
      %v543 = vpop.f32.mrb[0].mxu0
      %v544 = vadd.f32 0.0, %v543
      %v545 = vpop.f32.mrb[0].mxu0
      %546 = vmatprep.mubr.f32.mxu0 0.0
      %547 = vmatmul.mubr.f32.gmra.mrb[0].mxu0 %v438
      %v548 = vpop.f32.mrb[0].mxu0
      %v549 = vadd.f32 0.0, %v548
      %v550 = vpop.f32.mrb[0].mxu0
      %551 = vmatprep.mubr.f32.mxu0 0.0
      %552 = vmatmul.mubr.f32.gmra.mrb[0].mxu0 %v439
      %v553 = vpop.f32.mrb[0].mxu0
      %v554 = vadd.f32 0.0, %v553
      %v555 = vpop.f32.mrb[0].mxu0
      %556 = vmatprep.mubr.f32.mxu0 0.0
      %557 = vmatmul.mubr.f32.gmra.mrb[0].mxu0 %v440
      %v558 = vpop.f32.mrb[0].mxu0
      %v559 = vadd.f32 0.0, %v558
      %v560 = vpop.f32.mrb[0].mxu0
      %561 = vmatprep.mubr.f32.mxu0 0.0
      %562 = vmatmul.mubr.f32.gmra.mrb[0].mxu0 %v441
      %v563 = vpop.f32.mrb[0].mxu0
      %v564 = vadd.f32 0.0, %v563
      %v565 = vpop.f32.mrb[0].mxu0
      %566 = vmatprep.mubr.f32.mxu0 0.0
      %567 = vmatmul.mubr.f32.gmra.mrb[0].mxu0 %v442
      %v568 = vpop.f32.mrb[0].mxu0
      %v569 = vadd.f32 0.0, %v568
      %v570 = vpop.f32.mrb[0].mxu0
      %571 = vmatprep.mubr.f32.mxu0 0.0
      %572 = vmatmul.mubr.f32.gmra.mrb[0].mxu0 %v443
      %v573 = vpop.f32.mrb[0].mxu0
      %v574 = vadd.f32 0.0, %v573
      %v575 = vpop.f32.mrb[0].mxu0
      %576 = vmatprep.mubr.f32.mxu0 0.0
      %577 = vmatmul.mubr.f32.gmra.mrb[0].mxu0 %v444
      %v578 = vpop.f32.mrb[0].mxu0
      %v579 = vadd.f32 0.0, %v578
      %v580 = vpop.f32.mrb[0].mxu0
      %581 = vmatprep.mubr.f32.mxu0 0.0
      %582 = vmatmul.mubr.f32.gmra.mrb[0].mxu0 %v445
      %v583 = vpop.f32.mrb[0].mxu0
      %v584 = vadd.f32 0.0, %v583
      %v585 = vpop.f32.mrb[0].mxu0
      %586 = vmatprep.mubr.f32.mxu0 0.0
      %587 = vmatmul.mubr.f32.gmra.mrb[0].mxu0 %v446
      %v588 = vpop.f32.mrb[0].mxu0
      %v589 = vadd.f32 0.0, %v588
      %v590 = vpop.f32.mrb[0].mxu0
      %591 = vmatprep.mubr.f32.mxu0 0.0
      %592 = vmatmul.mubr.f32.gmra.mrb[0].mxu0 %v447
      %v593 = vpop.f32.mrb[0].mxu0
      %v594 = vadd.f32 0.0, %v593
      %v595 = vpop.f32.mrb[0].mxu0
      %596 = vmatprep.mubr.f32.mxu0 0.0
      %597 = vmatmul.mubr.f32.gmra.mrb[0].mxu0 %v448
      %v598 = vpop.f32.mrb[0].mxu0
      %v599 = vadd.f32 0.0, %v598
      %v600 = vpop.f32.mrb[0].mxu0
      %601 = vmatprep.mubr.f32.mxu0 0.0
      %602 = vmatmul.mubr.f32.gmra.mrb[0].mxu0 %v449
      %v603 = vpop.f32.mrb[0].mxu0
      %v604 = vadd.f32 0.0, %v603
      %v605 = vpop.f32.mrb[0].mxu0
      %606 = vmatprep.mubr.f32.mxu0 0.0
      %607 = vmatmul.mubr.f32.gmra.mrb[0].mxu0 %v450
      %v608 = vpop.f32.mrb[0].mxu0
      %v609 = vadd.f32 0.0, %v608
      %v610 = vpop.f32.mrb[0].mxu0
      %611 = vdwg.mxu0
      %v612 = vld [vmem:[%s2] sm:$0xff]
      %v613 = vld [vmem:[%s2 + $0x8] sm:$0xff]
      %v614 = vld [vmem:[%s2 + $0x10] sm:$0xff]
      %v615 = vld [vmem:[%s2 + $0x18] sm:$0xff]
      %v616 = vld [vmem:[%s2 + $0x20] sm:$0xff]
      %v617 = vld [vmem:[%s2 + $0x28] sm:$0xff]
      %v618 = vld [vmem:[%s2 + $0x30] sm:$0xff]
      %v619 = vld [vmem:[%s2 + $0x38] sm:$0xff]
      %v620 = vld [vmem:[%s2 + $0x40] sm:$0xff]
      %v621 = vld [vmem:[%s2 + $0x48] sm:$0xff]
      %v622 = vld [vmem:[%s2 + $0x50] sm:$0xff]
      %v623 = vld [vmem:[%s2 + $0x58] sm:$0xff]
      %v624 = vld [vmem:[%s2 + $0x60] sm:$0xff]
      %v625 = vld [vmem:[%s2 + $0x68] sm:$0xff]
      %v626 = vld [vmem:[%s2 + $0x70] sm:$0xff]
      %v627 = vld [vmem:[%s2 + $0x78] sm:$0xff]
      %v628 = vld [vmem:[%s3] sm:$0x1]
      %629 = vset.pattern.permute.xlu0 0
      %630 = vperm.xlu0 %629, %v612
      %v631 = vpop.permute.xlu0 %630
      %632 = vset.pattern.permute.xlu0 0
      %633 = vperm.xlu0 %632, %v613
      %v634 = vpop.permute.xlu0 %633
      %635 = vset.pattern.permute.xlu0 0
      %636 = vperm.xlu0 %635, %v614
      %v637 = vpop.permute.xlu0 %636
      %638 = vset.pattern.permute.xlu0 0
      %639 = vperm.xlu0 %638, %v615
      %v640 = vpop.permute.xlu0 %639
      %641 = vset.pattern.permute.xlu0 0
      %642 = vperm.xlu0 %641, %v616
      %v643 = vpop.permute.xlu0 %642
      %644 = vset.pattern.permute.xlu0 0
      %645 = vperm.xlu0 %644, %v617
      %v646 = vpop.permute.xlu0 %645
      %647 = vset.pattern.permute.xlu0 0
      %648 = vperm.xlu0 %647, %v618
      %v649 = vpop.permute.xlu0 %648
      %650 = vset.pattern.permute.xlu0 0
      %651 = vperm.xlu0 %650, %v619
      %v652 = vpop.permute.xlu0 %651
      %653 = vset.pattern.permute.xlu0 0
      %654 = vperm.xlu0 %653, %v620
      %v655 = vpop.permute.xlu0 %654
      %656 = vset.pattern.permute.xlu0 0
      %657 = vperm.xlu0 %656, %v621
      %v658 = vpop.permute.xlu0 %657
      %659 = vset.pattern.permute.xlu0 0
      %660 = vperm.xlu0 %659, %v622
      %v661 = vpop.permute.xlu0 %660
      %662 = vset.pattern.permute.xlu0 0
      %663 = vperm.xlu0 %662, %v623
      %v664 = vpop.permute.xlu0 %663
      %665 = vset.pattern.permute.xlu0 0
      %666 = vperm.xlu0 %665, %v624
      %v667 = vpop.permute.xlu0 %666
      %668 = vset.pattern.permute.xlu0 0
      %669 = vperm.xlu0 %668, %v625
      %v670 = vpop.permute.xlu0 %669
      %671 = vset.pattern.permute.xlu0 0
      %672 = vperm.xlu0 %671, %v626
      %v673 = vpop.permute.xlu0 %672
      %674 = vset.pattern.permute.xlu0 0
      %675 = vperm.xlu0 %674, %v627
      %v676 = vpop.permute.xlu0 %675
      %v677 = vlaneseq
      %v678 = vshrl.u32 %v677, 7
      %v679 = vsub.s32 0, %v678
      %v680 = vrot.slane %v628, %v679
      %vm681 = vcmp.eq.s32.totalorder %v631, %v680
      %vm682 = vcmp.eq.s32.totalorder %v634, %v680
      %vm683 = vcmp.eq.s32.totalorder %v637, %v680
      %vm684 = vcmp.eq.s32.totalorder %v640, %v680
      %vm685 = vcmp.eq.s32.totalorder %v643, %v680
      %vm686 = vcmp.eq.s32.totalorder %v646, %v680
      %vm687 = vcmp.eq.s32.totalorder %v649, %v680
      %vm688 = vcmp.eq.s32.totalorder %v652, %v680
      %vm689 = vcmp.eq.s32.totalorder %v655, %v680
      %vm690 = vcmp.eq.s32.totalorder %v658, %v680
      %vm691 = vcmp.eq.s32.totalorder %v661, %v680
      %vm692 = vcmp.eq.s32.totalorder %v664, %v680
      %vm693 = vcmp.eq.s32.totalorder %v667, %v680
      %vm694 = vcmp.eq.s32.totalorder %v670, %v680
      %vm695 = vcmp.eq.s32.totalorder %v673, %v680
      %vm696 = vcmp.eq.s32.totalorder %v676, %v680
      %v697 = vld [vmem:[#allocation4] sm:$0xff]
      %v698 = vld [vmem:[#allocation4 + $0x8] sm:$0xff]
      %v699 = vld [vmem:[#allocation4 + $0x10] sm:$0xff]
      %v700 = vld [vmem:[#allocation4 + $0x18] sm:$0xff]
      %v701 = vld [vmem:[#allocation4 + $0x20] sm:$0xff]
      %v702 = vld [vmem:[#allocation4 + $0x28] sm:$0xff]
      %v703 = vld [vmem:[#allocation4 + $0x30] sm:$0xff]
      %v704 = vld [vmem:[#allocation4 + $0x38] sm:$0xff]
      %v705 = vld [vmem:[#allocation4 + $0x40] sm:$0xff]
      %v706 = vld [vmem:[#allocation4 + $0x48] sm:$0xff]
      %v707 = vld [vmem:[#allocation4 + $0x50] sm:$0xff]
      %v708 = vld [vmem:[#allocation4 + $0x58] sm:$0xff]
      %v709 = vld [vmem:[#allocation4 + $0x60] sm:$0xff]
      %v710 = vld [vmem:[#allocation4 + $0x68] sm:$0xff]
      %v711 = vld [vmem:[#allocation4 + $0x70] sm:$0xff]
      %v712 = vld [vmem:[#allocation4 + $0x78] sm:$0xff]
      %v713 = vsel %vm681, %v534, 0.0
      %v714 = vsel %vm682, %v539, 0.0
      %v715 = vsel %vm683, %v544, 0.0
      %v716 = vsel %vm684, %v549, 0.0
      %v717 = vsel %vm685, %v554, 0.0
      %v718 = vsel %vm686, %v559, 0.0
      %v719 = vsel %vm687, %v564, 0.0
      %v720 = vsel %vm688, %v569, 0.0
      %v721 = vsel %vm689, %v574, 0.0
      %v722 = vsel %vm690, %v579, 0.0
      %v723 = vsel %vm691, %v584, 0.0
      %v724 = vsel %vm692, %v589, 0.0
      %v725 = vsel %vm693, %v594, 0.0
      %v726 = vsel %vm694, %v599, 0.0
      %v727 = vsel %vm695, %v604, 0.0
      %v728 = vsel %vm696, %v609, 0.0
      %729 = vadd.xlane.f32.xlu0 %v713
      %v730 = vpop.xlane.xlu0 %729
      %731 = vadd.xlane.f32.xlu0 %v714
      %v732 = vpop.xlane.xlu0 %731
      %733 = vadd.xlane.f32.xlu0 %v715
      %v734 = vpop.xlane.xlu0 %733
      %735 = vadd.xlane.f32.xlu0 %v716
      %v736 = vpop.xlane.xlu0 %735
      %737 = vadd.xlane.f32.xlu0 %v717
      %v738 = vpop.xlane.xlu0 %737
      %739 = vadd.xlane.f32.xlu0 %v718
      %v740 = vpop.xlane.xlu0 %739
      %741 = vadd.xlane.f32.xlu0 %v719
      %v742 = vpop.xlane.xlu0 %741
      %743 = vadd.xlane.f32.xlu0 %v720
      %v744 = vpop.xlane.xlu0 %743
      %745 = vadd.xlane.f32.xlu0 %v721
      %v746 = vpop.xlane.xlu0 %745
      %747 = vadd.xlane.f32.xlu0 %v722
      %v748 = vpop.xlane.xlu0 %747
      %749 = vadd.xlane.f32.xlu0 %v723
      %v750 = vpop.xlane.xlu0 %749
      %751 = vadd.xlane.f32.xlu0 %v724
      %v752 = vpop.xlane.xlu0 %751
      %753 = vadd.xlane.f32.xlu0 %v725
      %v754 = vpop.xlane.xlu0 %753
      %755 = vadd.xlane.f32.xlu0 %v726
      %v756 = vpop.xlane.xlu0 %755
      %757 = vadd.xlane.f32.xlu0 %v727
      %v758 = vpop.xlane.xlu0 %757
      %759 = vadd.xlane.f32.xlu0 %v728
      %v760 = vpop.xlane.xlu0 %759
      %v761 = vadd.f32 %v697, %v730
      %v762 = vadd.f32 %v698, %v732
      %v763 = vadd.f32 %v699, %v734
      %v764 = vadd.f32 %v700, %v736
      %v765 = vadd.f32 %v701, %v738
      %v766 = vadd.f32 %v702, %v740
      %v767 = vadd.f32 %v703, %v742
      %v768 = vadd.f32 %v704, %v744
      %v769 = vadd.f32 %v705, %v746
      %v770 = vadd.f32 %v706, %v748
      %v771 = vadd.f32 %v707, %v750
      %v772 = vadd.f32 %v708, %v752
      %v773 = vadd.f32 %v709, %v754
      %v774 = vadd.f32 %v710, %v756
      %v775 = vadd.f32 %v711, %v758
      %v776 = vadd.f32 %v712, %v760
      %vm777 = vcmask 7168
      %778 = vst.msk [vmem:[#allocation4] sm:$0xff] %vm777, %v761
      %779 = vst.msk [vmem:[#allocation4 + $0x8] sm:$0xff] %vm777, %v762
      %780 = vst.msk [vmem:[#allocation4 + $0x10] sm:$0xff] %vm777, %v763
      %781 = vst.msk [vmem:[#allocation4 + $0x18] sm:$0xff] %vm777, %v764
      %782 = vst.msk [vmem:[#allocation4 + $0x20] sm:$0xff] %vm777, %v765
      %783 = vst.msk [vmem:[#allocation4 + $0x28] sm:$0xff] %vm777, %v766
      %784 = vst.msk [vmem:[#allocation4 + $0x30] sm:$0xff] %vm777, %v767
      %785 = vst.msk [vmem:[#allocation4 + $0x38] sm:$0xff] %vm777, %v768
      %786 = vst.msk [vmem:[#allocation4 + $0x40] sm:$0xff] %vm777, %v769
      %787 = vst.msk [vmem:[#allocation4 + $0x48] sm:$0xff] %vm777, %v770
      %788 = vst.msk [vmem:[#allocation4 + $0x50] sm:$0xff] %vm777, %v771
      %789 = vst.msk [vmem:[#allocation4 + $0x58] sm:$0xff] %vm777, %v772
      %790 = vst.msk [vmem:[#allocation4 + $0x60] sm:$0xff] %vm777, %v773
      %791 = vst.msk [vmem:[#allocation4 + $0x68] sm:$0xff] %vm777, %v774
      %792 = vst.msk [vmem:[#allocation4 + $0x70] sm:$0xff] %vm777, %v775
      %793 = vst.msk [vmem:[#allocation4 + $0x78] sm:$0xff] %vm777, %v776
      %v794 = vld [vmem:[#allocation2] sm:$0xff]
      %v795 = vld [vmem:[#allocation2 + $0x8] sm:$0xff]
      %v796 = vld [vmem:[#allocation2 + $0x10] sm:$0xff]
      %v797 = vld [vmem:[#allocation2 + $0x18] sm:$0xff]
      %v798 = vld [vmem:[#allocation2 + $0x20] sm:$0xff]
      %v799 = vld [vmem:[#allocation2 + $0x28] sm:$0xff]
      %v800 = vld [vmem:[#allocation2 + $0x30] sm:$0xff]
      %v801 = vld [vmem:[#allocation2 + $0x38] sm:$0xff]
      %v802 = vld [vmem:[#allocation2 + $0x40] sm:$0xff]
      %v803 = vld [vmem:[#allocation2 + $0x48] sm:$0xff]
      %v804 = vld [vmem:[#allocation2 + $0x50] sm:$0xff]
      %v805 = vld [vmem:[#allocation2 + $0x58] sm:$0xff]
      %v806 = vld [vmem:[#allocation2 + $0x60] sm:$0xff]
      %v807 = vld [vmem:[#allocation2 + $0x68] sm:$0xff]
      %v808 = vld [vmem:[#allocation2 + $0x70] sm:$0xff]
      %v809 = vld [vmem:[#allocation2 + $0x78] sm:$0xff]
      %810 = vmax.xlane.f32.xlu0 %v534
      %v811 = vpop.xlane.xlu0 %810
      %812 = vmax.xlane.f32.xlu0 %v539
      %v813 = vpop.xlane.xlu0 %812
      %814 = vmax.xlane.f32.xlu0 %v544
      %v815 = vpop.xlane.xlu0 %814
      %816 = vmax.xlane.f32.xlu0 %v549
      %v817 = vpop.xlane.xlu0 %816
      %818 = vmax.xlane.f32.xlu0 %v554
      %v819 = vpop.xlane.xlu0 %818
      %820 = vmax.xlane.f32.xlu0 %v559
      %v821 = vpop.xlane.xlu0 %820
      %822 = vmax.xlane.f32.xlu0 %v564
      %v823 = vpop.xlane.xlu0 %822
      %824 = vmax.xlane.f32.xlu0 %v569
      %v825 = vpop.xlane.xlu0 %824
      %826 = vmax.xlane.f32.xlu0 %v574
      %v827 = vpop.xlane.xlu0 %826
      %828 = vmax.xlane.f32.xlu0 %v579
      %v829 = vpop.xlane.xlu0 %828
      %830 = vmax.xlane.f32.xlu0 %v584
      %v831 = vpop.xlane.xlu0 %830
      %832 = vmax.xlane.f32.xlu0 %v589
      %v833 = vpop.xlane.xlu0 %832
      %834 = vmax.xlane.f32.xlu0 %v594
      %v835 = vpop.xlane.xlu0 %834
      %836 = vmax.xlane.f32.xlu0 %v599
      %v837 = vpop.xlane.xlu0 %836
      %838 = vmax.xlane.f32.xlu0 %v604
      %v839 = vpop.xlane.xlu0 %838
      %840 = vmax.xlane.f32.xlu0 %v609
      %v841 = vpop.xlane.xlu0 %840
      %v842 = vmax.f32 %v794, %v811
      %v843 = vmax.f32 %v795, %v813
      %v844 = vmax.f32 %v796, %v815
      %v845 = vmax.f32 %v797, %v817
      %v846 = vmax.f32 %v798, %v819
      %v847 = vmax.f32 %v799, %v821
      %v848 = vmax.f32 %v800, %v823
      %v849 = vmax.f32 %v801, %v825
      %v850 = vmax.f32 %v802, %v827
      %v851 = vmax.f32 %v803, %v829
      %v852 = vmax.f32 %v804, %v831
      %v853 = vmax.f32 %v805, %v833
      %v854 = vmax.f32 %v806, %v835
      %v855 = vmax.f32 %v807, %v837
      %v856 = vmax.f32 %v808, %v839
      %v857 = vmax.f32 %v809, %v841
      %v858 = vld [vmem:[#allocation3] sm:$0xff]
      %v859 = vld [vmem:[#allocation3 + $0x8] sm:$0xff]
      %v860 = vld [vmem:[#allocation3 + $0x10] sm:$0xff]
      %v861 = vld [vmem:[#allocation3 + $0x18] sm:$0xff]
      %v862 = vld [vmem:[#allocation3 + $0x20] sm:$0xff]
      %v863 = vld [vmem:[#allocation3 + $0x28] sm:$0xff]
      %v864 = vld [vmem:[#allocation3 + $0x30] sm:$0xff]
      %v865 = vld [vmem:[#allocation3 + $0x38] sm:$0xff]
      %v866 = vld [vmem:[#allocation3 + $0x40] sm:$0xff]
      %v867 = vld [vmem:[#allocation3 + $0x48] sm:$0xff]
      %v868 = vld [vmem:[#allocation3 + $0x50] sm:$0xff]
      %v869 = vld [vmem:[#allocation3 + $0x58] sm:$0xff]
      %v870 = vld [vmem:[#allocation3 + $0x60] sm:$0xff]
      %v871 = vld [vmem:[#allocation3 + $0x68] sm:$0xff]
      %v872 = vld [vmem:[#allocation3 + $0x70] sm:$0xff]
      %v873 = vld [vmem:[#allocation3 + $0x78] sm:$0xff]
      %v874 = vsub.f32 %v794, %v842
      %v875 = vsub.f32 %v795, %v843
      %v876 = vsub.f32 %v796, %v844
      %v877 = vsub.f32 %v797, %v845
      %v878 = vsub.f32 %v798, %v846
      %v879 = vsub.f32 %v799, %v847
      %v880 = vsub.f32 %v800, %v848
      %v881 = vsub.f32 %v801, %v849
      %v882 = vsub.f32 %v802, %v850
      %v883 = vsub.f32 %v803, %v851
      %v884 = vsub.f32 %v804, %v852
      %v885 = vsub.f32 %v805, %v853
      %v886 = vsub.f32 %v806, %v854
      %v887 = vsub.f32 %v807, %v855
      %v888 = vsub.f32 %v808, %v856
      %v889 = vsub.f32 %v809, %v857
      %v890 = vmul.f32 %v874, 1.442695
      %v891 = vpow.pop %v890
      %v892 = vmul.f32 %v875, 1.442695
      %v893 = vpow.pop %v892
      %v894 = vmul.f32 %v876, 1.442695
      %v895 = vpow.pop %v894
      %v896 = vmul.f32 %v877, 1.442695
      %v897 = vpow.pop %v896
      %v898 = vmul.f32 %v878, 1.442695
      %v899 = vpow.pop %v898
      %v900 = vmul.f32 %v879, 1.442695
      %v901 = vpow.pop %v900
      %v902 = vmul.f32 %v880, 1.442695
      %v903 = vpow.pop %v902
      %v904 = vmul.f32 %v881, 1.442695
      %v905 = vpow.pop %v904
      %v906 = vmul.f32 %v882, 1.442695
      %v907 = vpow.pop %v906
      %v908 = vmul.f32 %v883, 1.442695
      %v909 = vpow.pop %v908
      %v910 = vmul.f32 %v884, 1.442695
      %v911 = vpow.pop %v910
      %v912 = vmul.f32 %v885, 1.442695
      %v913 = vpow.pop %v912
      %v914 = vmul.f32 %v886, 1.442695
      %v915 = vpow.pop %v914
      %v916 = vmul.f32 %v887, 1.442695
      %v917 = vpow.pop %v916
      %v918 = vmul.f32 %v888, 1.442695
      %v919 = vpow.pop %v918
      %v920 = vmul.f32 %v889, 1.442695
      %v921 = vpow.pop %v920
      %v922 = vmul.f32 %v858, %v891
      %v923 = vmul.f32 %v859, %v893
      %v924 = vmul.f32 %v860, %v895
      %v925 = vmul.f32 %v861, %v897
      %v926 = vmul.f32 %v862, %v899
      %v927 = vmul.f32 %v863, %v901
      %v928 = vmul.f32 %v864, %v903
      %v929 = vmul.f32 %v865, %v905
      %v930 = vmul.f32 %v866, %v907
      %v931 = vmul.f32 %v867, %v909
      %v932 = vmul.f32 %v868, %v911
      %v933 = vmul.f32 %v869, %v913
      %v934 = vmul.f32 %v870, %v915
      %v935 = vmul.f32 %v871, %v917
      %v936 = vmul.f32 %v872, %v919
      %v937 = vmul.f32 %v873, %v921
      %939 = vset.pattern.permute.xlu0 0
      %940 = vperm.xlu0 %939, %v842
      %v941 = vpop.permute.xlu0 %940
      %944 = vset.pattern.permute.xlu0 0
      %945 = vperm.xlu0 %944, %v843
      %v946 = vpop.permute.xlu0 %945
      %949 = vset.pattern.permute.xlu0 0
      %950 = vperm.xlu0 %949, %v844
      %v951 = vpop.permute.xlu0 %950
      %954 = vset.pattern.permute.xlu0 0
      %955 = vperm.xlu0 %954, %v845
      %v956 = vpop.permute.xlu0 %955
      %959 = vset.pattern.permute.xlu0 0
      %960 = vperm.xlu0 %959, %v846
      %v961 = vpop.permute.xlu0 %960
      %964 = vset.pattern.permute.xlu0 0
      %965 = vperm.xlu0 %964, %v847
      %v966 = vpop.permute.xlu0 %965
      %969 = vset.pattern.permute.xlu0 0
      %970 = vperm.xlu0 %969, %v848
      %v971 = vpop.permute.xlu0 %970
      %974 = vset.pattern.permute.xlu0 0
      %975 = vperm.xlu0 %974, %v849
      %v976 = vpop.permute.xlu0 %975
      %979 = vset.pattern.permute.xlu0 0
      %980 = vperm.xlu0 %979, %v850
      %v981 = vpop.permute.xlu0 %980
      %984 = vset.pattern.permute.xlu0 0
      %985 = vperm.xlu0 %984, %v851
      %v986 = vpop.permute.xlu0 %985
      %989 = vset.pattern.permute.xlu0 0
      %990 = vperm.xlu0 %989, %v852
      %v991 = vpop.permute.xlu0 %990
      %994 = vset.pattern.permute.xlu0 0
      %995 = vperm.xlu0 %994, %v853
      %v996 = vpop.permute.xlu0 %995
      %999 = vset.pattern.permute.xlu0 0
      %1000 = vperm.xlu0 %999, %v854
      %v1001 = vpop.permute.xlu0 %1000
      %1004 = vset.pattern.permute.xlu0 0
      %1005 = vperm.xlu0 %1004, %v855
      %v1006 = vpop.permute.xlu0 %1005
      %1009 = vset.pattern.permute.xlu0 0
      %1010 = vperm.xlu0 %1009, %v856
      %v1011 = vpop.permute.xlu0 %1010
      %1014 = vset.pattern.permute.xlu0 0
      %1015 = vperm.xlu0 %1014, %v857
      %v1016 = vpop.permute.xlu0 %1015
      %v1018 = vsub.f32 %v534, %v941
      %v1019 = vsub.f32 %v539, %v946
      %v1020 = vsub.f32 %v544, %v951
      %v1021 = vsub.f32 %v549, %v956
      %v1022 = vsub.f32 %v554, %v961
      %v1023 = vsub.f32 %v559, %v966
      %v1024 = vsub.f32 %v564, %v971
      %v1025 = vsub.f32 %v569, %v976
      %v1026 = vsub.f32 %v574, %v981
      %v1027 = vsub.f32 %v579, %v986
      %v1028 = vsub.f32 %v584, %v991
      %v1029 = vsub.f32 %v589, %v996
      %v1030 = vsub.f32 %v594, %v1001
      %v1031 = vsub.f32 %v599, %v1006
      %v1032 = vsub.f32 %v604, %v1011
      %v1033 = vsub.f32 %v609, %v1016
      %v1034 = vmul.f32 %v1018, 1.442695
      %v1035 = vpow.pop %v1034
      %v1036 = vmul.f32 %v1019, 1.442695
      %v1037 = vpow.pop %v1036
      %v1038 = vmul.f32 %v1020, 1.442695
      %v1039 = vpow.pop %v1038
      %v1040 = vmul.f32 %v1021, 1.442695
      %v1041 = vpow.pop %v1040
      %v1042 = vmul.f32 %v1022, 1.442695
      %v1043 = vpow.pop %v1042
      %v1044 = vmul.f32 %v1023, 1.442695
      %v1045 = vpow.pop %v1044
      %v1046 = vmul.f32 %v1024, 1.442695
      %v1047 = vpow.pop %v1046
      %v1048 = vmul.f32 %v1025, 1.442695
      %v1049 = vpow.pop %v1048
      %v1050 = vmul.f32 %v1026, 1.442695
      %v1051 = vpow.pop %v1050
      %v1052 = vmul.f32 %v1027, 1.442695
      %v1053 = vpow.pop %v1052
      %v1054 = vmul.f32 %v1028, 1.442695
      %v1055 = vpow.pop %v1054
      %v1056 = vmul.f32 %v1029, 1.442695
      %v1057 = vpow.pop %v1056
      %v1058 = vmul.f32 %v1030, 1.442695
      %v1059 = vpow.pop %v1058
      %v1060 = vmul.f32 %v1031, 1.442695
      %v1061 = vpow.pop %v1060
      %v1062 = vmul.f32 %v1032, 1.442695
      %v1063 = vpow.pop %v1062
      %v1064 = vmul.f32 %v1033, 1.442695
      %v1065 = vpow.pop %v1064
      %1066 = vadd.xlane.f32.xlu0 %v1035
      %v1067 = vpop.xlane.xlu0 %1066
      %1068 = vadd.xlane.f32.xlu0 %v1037
      %v1069 = vpop.xlane.xlu0 %1068
      %1070 = vadd.xlane.f32.xlu0 %v1039
      %v1071 = vpop.xlane.xlu0 %1070
      %1072 = vadd.xlane.f32.xlu0 %v1041
      %v1073 = vpop.xlane.xlu0 %1072
      %1074 = vadd.xlane.f32.xlu0 %v1043
      %v1075 = vpop.xlane.xlu0 %1074
      %1076 = vadd.xlane.f32.xlu0 %v1045
      %v1077 = vpop.xlane.xlu0 %1076
      %1078 = vadd.xlane.f32.xlu0 %v1047
      %v1079 = vpop.xlane.xlu0 %1078
      %1080 = vadd.xlane.f32.xlu0 %v1049
      %v1081 = vpop.xlane.xlu0 %1080
      %1082 = vadd.xlane.f32.xlu0 %v1051
      %v1083 = vpop.xlane.xlu0 %1082
      %1084 = vadd.xlane.f32.xlu0 %v1053
      %v1085 = vpop.xlane.xlu0 %1084
      %1086 = vadd.xlane.f32.xlu0 %v1055
      %v1087 = vpop.xlane.xlu0 %1086
      %1088 = vadd.xlane.f32.xlu0 %v1057
      %v1089 = vpop.xlane.xlu0 %1088
      %1090 = vadd.xlane.f32.xlu0 %v1059
      %v1091 = vpop.xlane.xlu0 %1090
      %1092 = vadd.xlane.f32.xlu0 %v1061
      %v1093 = vpop.xlane.xlu0 %1092
      %1094 = vadd.xlane.f32.xlu0 %v1063
      %v1095 = vpop.xlane.xlu0 %1094
      %1096 = vadd.xlane.f32.xlu0 %v1065
      %v1097 = vpop.xlane.xlu0 %1096
      %v1098 = vadd.f32 %v922, %v1067
      %v1099 = vadd.f32 %v923, %v1069
      %v1100 = vadd.f32 %v924, %v1071
      %v1101 = vadd.f32 %v925, %v1073
      %v1102 = vadd.f32 %v926, %v1075
      %v1103 = vadd.f32 %v927, %v1077
      %v1104 = vadd.f32 %v928, %v1079
      %v1105 = vadd.f32 %v929, %v1081
      %v1106 = vadd.f32 %v930, %v1083
      %v1107 = vadd.f32 %v931, %v1085
      %v1108 = vadd.f32 %v932, %v1087
      %v1109 = vadd.f32 %v933, %v1089
      %v1110 = vadd.f32 %v934, %v1091
      %v1111 = vadd.f32 %v935, %v1093
      %v1112 = vadd.f32 %v936, %v1095
      %v1113 = vadd.f32 %v937, %v1097
      %1114 = vst.msk [vmem:[#allocation3] sm:$0xff] %vm777, %v1098
      %1115 = vst.msk [vmem:[#allocation3 + $0x8] sm:$0xff] %vm777, %v1099
      %1116 = vst.msk [vmem:[#allocation3 + $0x10] sm:$0xff] %vm777, %v1100
      %1117 = vst.msk [vmem:[#allocation3 + $0x18] sm:$0xff] %vm777, %v1101
      %1118 = vst.msk [vmem:[#allocation3 + $0x20] sm:$0xff] %vm777, %v1102
      %1119 = vst.msk [vmem:[#allocation3 + $0x28] sm:$0xff] %vm777, %v1103
      %1120 = vst.msk [vmem:[#allocation3 + $0x30] sm:$0xff] %vm777, %v1104
      %1121 = vst.msk [vmem:[#allocation3 + $0x38] sm:$0xff] %vm777, %v1105
      %1122 = vst.msk [vmem:[#allocation3 + $0x40] sm:$0xff] %vm777, %v1106
      %1123 = vst.msk [vmem:[#allocation3 + $0x48] sm:$0xff] %vm777, %v1107
      %1124 = vst.msk [vmem:[#allocation3 + $0x50] sm:$0xff] %vm777, %v1108
      %1125 = vst.msk [vmem:[#allocation3 + $0x58] sm:$0xff] %vm777, %v1109
      %1126 = vst.msk [vmem:[#allocation3 + $0x60] sm:$0xff] %vm777, %v1110
      %1127 = vst.msk [vmem:[#allocation3 + $0x68] sm:$0xff] %vm777, %v1111
      %1128 = vst.msk [vmem:[#allocation3 + $0x70] sm:$0xff] %vm777, %v1112
      %1129 = vst.msk [vmem:[#allocation3 + $0x78] sm:$0xff] %vm777, %v1113
      %1130 = vst.msk [vmem:[#allocation2] sm:$0xff] %vm777, %v842
      %1131 = vst.msk [vmem:[#allocation2 + $0x8] sm:$0xff] %vm777, %v843
      %1132 = vst.msk [vmem:[#allocation2 + $0x10] sm:$0xff] %vm777, %v844
      %1133 = vst.msk [vmem:[#allocation2 + $0x18] sm:$0xff] %vm777, %v845
      %1134 = vst.msk [vmem:[#allocation2 + $0x20] sm:$0xff] %vm777, %v846
      %1135 = vst.msk [vmem:[#allocation2 + $0x28] sm:$0xff] %vm777, %v847
      %1136 = vst.msk [vmem:[#allocation2 + $0x30] sm:$0xff] %vm777, %v848
      %1137 = vst.msk [vmem:[#allocation2 + $0x38] sm:$0xff] %vm777, %v849
      %1138 = vst.msk [vmem:[#allocation2 + $0x40] sm:$0xff] %vm777, %v850
      %1139 = vst.msk [vmem:[#allocation2 + $0x48] sm:$0xff] %vm777, %v851
      %1140 = vst.msk [vmem:[#allocation2 + $0x50] sm:$0xff] %vm777, %v852
      %1141 = vst.msk [vmem:[#allocation2 + $0x58] sm:$0xff] %vm777, %v853
      %1142 = vst.msk [vmem:[#allocation2 + $0x60] sm:$0xff] %vm777, %v854
      %1143 = vst.msk [vmem:[#allocation2 + $0x68] sm:$0xff] %vm777, %v855
      %1144 = vst.msk [vmem:[#allocation2 + $0x70] sm:$0xff] %vm777, %v856
      %1145 = vst.msk [vmem:[#allocation2 + $0x78] sm:$0xff] %vm777, %v857
      %p1146 = scmp.eq.s32.totalorder %s23, 1
      // Predicated region
      $region53: #{tpu_custom_call.1} parent=47 // pred_check
        %p1147 = pneg %p1146
      $region54: #{tpu_custom_call.1} parent=47 // pred_check_branch
        %1149 = sbr.rel (%p1147) target = $region56
      $region55: #{tpu_custom_call.1} parent=47 // pred_region
        %v1150 = vld [vmem:[#allocation2] sm:$0xff]
        %v1151 = vld [vmem:[#allocation2 + $0x8] sm:$0xff]
        %v1152 = vld [vmem:[#allocation2 + $0x10] sm:$0xff]
        %v1153 = vld [vmem:[#allocation2 + $0x18] sm:$0xff]
        %v1154 = vld [vmem:[#allocation2 + $0x20] sm:$0xff]
        %v1155 = vld [vmem:[#allocation2 + $0x28] sm:$0xff]
        %v1156 = vld [vmem:[#allocation2 + $0x30] sm:$0xff]
        %v1157 = vld [vmem:[#allocation2 + $0x38] sm:$0xff]
        %v1158 = vld [vmem:[#allocation2 + $0x40] sm:$0xff]
        %v1159 = vld [vmem:[#allocation2 + $0x48] sm:$0xff]
        %v1160 = vld [vmem:[#allocation2 + $0x50] sm:$0xff]
        %v1161 = vld [vmem:[#allocation2 + $0x58] sm:$0xff]
        %v1162 = vld [vmem:[#allocation2 + $0x60] sm:$0xff]
        %v1163 = vld [vmem:[#allocation2 + $0x68] sm:$0xff]
        %v1164 = vld [vmem:[#allocation2 + $0x70] sm:$0xff]
        %v1165 = vld [vmem:[#allocation2 + $0x78] sm:$0xff]
        %v1166 = vld [vmem:[#allocation3] sm:$0xff]
        %v1167 = vld [vmem:[#allocation3 + $0x8] sm:$0xff]
        %v1168 = vld [vmem:[#allocation3 + $0x10] sm:$0xff]
        %v1169 = vld [vmem:[#allocation3 + $0x18] sm:$0xff]
        %v1170 = vld [vmem:[#allocation3 + $0x20] sm:$0xff]
        %v1171 = vld [vmem:[#allocation3 + $0x28] sm:$0xff]
        %v1172 = vld [vmem:[#allocation3 + $0x30] sm:$0xff]
        %v1173 = vld [vmem:[#allocation3 + $0x38] sm:$0xff]
        %v1174 = vld [vmem:[#allocation3 + $0x40] sm:$0xff]
        %v1175 = vld [vmem:[#allocation3 + $0x48] sm:$0xff]
        %v1176 = vld [vmem:[#allocation3 + $0x50] sm:$0xff]
        %v1177 = vld [vmem:[#allocation3 + $0x58] sm:$0xff]
        %v1178 = vld [vmem:[#allocation3 + $0x60] sm:$0xff]
        %v1179 = vld [vmem:[#allocation3 + $0x68] sm:$0xff]
        %v1180 = vld [vmem:[#allocation3 + $0x70] sm:$0xff]
        %v1181 = vld [vmem:[#allocation3 + $0x78] sm:$0xff]
        %v1182 = vsub.f32 0.0, %v1150
        %v1183 = vsub.f32 0.0, %v1151
        %v1184 = vsub.f32 0.0, %v1152
        %v1185 = vsub.f32 0.0, %v1153
        %v1186 = vsub.f32 0.0, %v1154
        %v1187 = vsub.f32 0.0, %v1155
        %v1188 = vsub.f32 0.0, %v1156
        %v1189 = vsub.f32 0.0, %v1157
        %v1190 = vsub.f32 0.0, %v1158
        %v1191 = vsub.f32 0.0, %v1159
        %v1192 = vsub.f32 0.0, %v1160
        %v1193 = vsub.f32 0.0, %v1161
        %v1194 = vsub.f32 0.0, %v1162
        %v1195 = vsub.f32 0.0, %v1163
        %v1196 = vsub.f32 0.0, %v1164
        %v1197 = vsub.f32 0.0, %v1165
        %v1198 = vmul.f32 %v1182, 1.442695
        %v1199 = vpow.pop %v1198
        %v1200 = vmul.f32 %v1183, 1.442695
        %v1201 = vpow.pop %v1200
        %v1202 = vmul.f32 %v1184, 1.442695
        %v1203 = vpow.pop %v1202
        %v1204 = vmul.f32 %v1185, 1.442695
        %v1205 = vpow.pop %v1204
        %v1206 = vmul.f32 %v1186, 1.442695
        %v1207 = vpow.pop %v1206
        %v1208 = vmul.f32 %v1187, 1.442695
        %v1209 = vpow.pop %v1208
        %v1210 = vmul.f32 %v1188, 1.442695
        %v1211 = vpow.pop %v1210
        %v1212 = vmul.f32 %v1189, 1.442695
        %v1213 = vpow.pop %v1212
        %v1214 = vmul.f32 %v1190, 1.442695
        %v1215 = vpow.pop %v1214
        %v1216 = vmul.f32 %v1191, 1.442695
        %v1217 = vpow.pop %v1216
        %v1218 = vmul.f32 %v1192, 1.442695
        %v1219 = vpow.pop %v1218
        %v1220 = vmul.f32 %v1193, 1.442695
        %v1221 = vpow.pop %v1220
        %v1222 = vmul.f32 %v1194, 1.442695
        %v1223 = vpow.pop %v1222
        %v1224 = vmul.f32 %v1195, 1.442695
        %v1225 = vpow.pop %v1224
        %v1226 = vmul.f32 %v1196, 1.442695
        %v1227 = vpow.pop %v1226
        %v1228 = vmul.f32 %v1197, 1.442695
        %v1229 = vpow.pop %v1228
        %v1230 = vmul.f32 %v1199, 240.0
        %v1231 = vmul.f32 %v1201, 240.0
        %v1232 = vmul.f32 %v1203, 240.0
        %v1233 = vmul.f32 %v1205, 240.0
        %v1234 = vmul.f32 %v1207, 240.0
        %v1235 = vmul.f32 %v1209, 240.0
        %v1236 = vmul.f32 %v1211, 240.0
        %v1237 = vmul.f32 %v1213, 240.0
        %v1238 = vmul.f32 %v1215, 240.0
        %v1239 = vmul.f32 %v1217, 240.0
        %v1240 = vmul.f32 %v1219, 240.0
        %v1241 = vmul.f32 %v1221, 240.0
        %v1242 = vmul.f32 %v1223, 240.0
        %v1243 = vmul.f32 %v1225, 240.0
        %v1244 = vmul.f32 %v1227, 240.0
        %v1245 = vmul.f32 %v1229, 240.0
        %v1246 = vsub.f32 %v1166, %v1230
        %v1247 = vsub.f32 %v1167, %v1231
        %v1248 = vsub.f32 %v1168, %v1232
        %v1249 = vsub.f32 %v1169, %v1233
        %v1250 = vsub.f32 %v1170, %v1234
        %v1251 = vsub.f32 %v1171, %v1235
        %v1252 = vsub.f32 %v1172, %v1236
        %v1253 = vsub.f32 %v1173, %v1237
        %v1254 = vsub.f32 %v1174, %v1238
        %v1255 = vsub.f32 %v1175, %v1239
        %v1256 = vsub.f32 %v1176, %v1240
        %v1257 = vsub.f32 %v1177, %v1241
        %v1258 = vsub.f32 %v1178, %v1242
        %v1259 = vsub.f32 %v1179, %v1243
        %v1260 = vsub.f32 %v1180, %v1244
        %v1261 = vsub.f32 %v1181, %v1245
        %v1262 = vld [vmem:[%s362] sm:$0xff]
        %v1263 = vld [vmem:[%s362 + $0x8] sm:$0xff]
        %v1264 = vld [vmem:[%s362 + $0x10] sm:$0xff]
        %v1265 = vld [vmem:[%s362 + $0x18] sm:$0xff]
        %v1266 = vld [vmem:[%s362 + $0x20] sm:$0xff]
        %v1267 = vld [vmem:[%s362 + $0x28] sm:$0xff]
        %v1268 = vld [vmem:[%s362 + $0x30] sm:$0xff]
        %v1269 = vld [vmem:[%s362 + $0x38] sm:$0xff]
        %v1270 = vld [vmem:[%s362 + $0x40] sm:$0xff]
        %v1271 = vld [vmem:[%s362 + $0x48] sm:$0xff]
        %v1272 = vld [vmem:[%s362 + $0x50] sm:$0xff]
        %v1273 = vld [vmem:[%s362 + $0x58] sm:$0xff]
        %v1274 = vld [vmem:[%s362 + $0x60] sm:$0xff]
        %v1275 = vld [vmem:[%s362 + $0x68] sm:$0xff]
        %v1276 = vld [vmem:[%s362 + $0x70] sm:$0xff]
        %v1277 = vld [vmem:[%s362 + $0x78] sm:$0xff]
        %v1278 = vsub.f32 %v1262, %v1150
        %v1279 = vsub.f32 %v1263, %v1151
        %v1280 = vsub.f32 %v1264, %v1152
        %v1281 = vsub.f32 %v1265, %v1153
        %v1282 = vsub.f32 %v1266, %v1154
        %v1283 = vsub.f32 %v1267, %v1155
        %v1284 = vsub.f32 %v1268, %v1156
        %v1285 = vsub.f32 %v1269, %v1157
        %v1286 = vsub.f32 %v1270, %v1158
        %v1287 = vsub.f32 %v1271, %v1159
        %v1288 = vsub.f32 %v1272, %v1160
        %v1289 = vsub.f32 %v1273, %v1161
        %v1290 = vsub.f32 %v1274, %v1162
        %v1291 = vsub.f32 %v1275, %v1163
        %v1292 = vsub.f32 %v1276, %v1164
        %v1293 = vsub.f32 %v1277, %v1165
        %v1294 = vmul.f32 %v1278, 1.442695
        %v1295 = vpow.pop %v1294
        %v1296 = vmul.f32 %v1279, 1.442695
        %v1297 = vpow.pop %v1296
        %v1298 = vmul.f32 %v1280, 1.442695
        %v1299 = vpow.pop %v1298
        %v1300 = vmul.f32 %v1281, 1.442695
        %v1301 = vpow.pop %v1300
        %v1302 = vmul.f32 %v1282, 1.442695
        %v1303 = vpow.pop %v1302
        %v1304 = vmul.f32 %v1283, 1.442695
        %v1305 = vpow.pop %v1304
        %v1306 = vmul.f32 %v1284, 1.442695
        %v1307 = vpow.pop %v1306
        %v1308 = vmul.f32 %v1285, 1.442695
        %v1309 = vpow.pop %v1308
        %v1310 = vmul.f32 %v1286, 1.442695
        %v1311 = vpow.pop %v1310
        %v1312 = vmul.f32 %v1287, 1.442695
        %v1313 = vpow.pop %v1312
        %v1314 = vmul.f32 %v1288, 1.442695
        %v1315 = vpow.pop %v1314
        %v1316 = vmul.f32 %v1289, 1.442695
        %v1317 = vpow.pop %v1316
        %v1318 = vmul.f32 %v1290, 1.442695
        %v1319 = vpow.pop %v1318
        %v1320 = vmul.f32 %v1291, 1.442695
        %v1321 = vpow.pop %v1320
        %v1322 = vmul.f32 %v1292, 1.442695
        %v1323 = vpow.pop %v1322
        %v1324 = vmul.f32 %v1293, 1.442695
        %v1325 = vpow.pop %v1324
        %v1326 = vsub.f32 %v1246, %v1295
        %v1327 = vsub.f32 %v1247, %v1297
        %v1328 = vsub.f32 %v1248, %v1299
        %v1329 = vsub.f32 %v1249, %v1301
        %v1330 = vsub.f32 %v1250, %v1303
        %v1331 = vsub.f32 %v1251, %v1305
        %v1332 = vsub.f32 %v1252, %v1307
        %v1333 = vsub.f32 %v1253, %v1309
        %v1334 = vsub.f32 %v1254, %v1311
        %v1335 = vsub.f32 %v1255, %v1313
        %v1336 = vsub.f32 %v1256, %v1315
        %v1337 = vsub.f32 %v1257, %v1317
        %v1338 = vsub.f32 %v1258, %v1319
        %v1339 = vsub.f32 %v1259, %v1321
        %v1340 = vsub.f32 %v1260, %v1323
        %v1341 = vsub.f32 %v1261, %v1325
        %v1342 = vmax.f32 %v1326, 0.0
        %v1343 = vmax.f32 %v1327, 0.0
        %v1344 = vmax.f32 %v1328, 0.0
        %v1345 = vmax.f32 %v1329, 0.0
        %v1346 = vmax.f32 %v1330, 0.0
        %v1347 = vmax.f32 %v1331, 0.0
        %v1348 = vmax.f32 %v1332, 0.0
        %v1349 = vmax.f32 %v1333, 0.0
        %v1350 = vmax.f32 %v1334, 0.0
        %v1351 = vmax.f32 %v1335, 0.0
        %v1352 = vmax.f32 %v1336, 0.0
        %v1353 = vmax.f32 %v1337, 0.0
        %v1354 = vmax.f32 %v1338, 0.0
        %v1355 = vmax.f32 %v1339, 0.0
        %v1356 = vmax.f32 %v1340, 0.0
        %v1357 = vmax.f32 %v1341, 0.0
        %v1358 = vld [vmem:[#allocation4] sm:$0xff]
        %v1359 = vld [vmem:[#allocation4 + $0x8] sm:$0xff]
        %v1360 = vld [vmem:[#allocation4 + $0x10] sm:$0xff]
        %v1361 = vld [vmem:[#allocation4 + $0x18] sm:$0xff]
        %v1362 = vld [vmem:[#allocation4 + $0x20] sm:$0xff]
        %v1363 = vld [vmem:[#allocation4 + $0x28] sm:$0xff]
        %v1364 = vld [vmem:[#allocation4 + $0x30] sm:$0xff]
        %v1365 = vld [vmem:[#allocation4 + $0x38] sm:$0xff]
        %v1366 = vld [vmem:[#allocation4 + $0x40] sm:$0xff]
        %v1367 = vld [vmem:[#allocation4 + $0x48] sm:$0xff]
        %v1368 = vld [vmem:[#allocation4 + $0x50] sm:$0xff]
        %v1369 = vld [vmem:[#allocation4 + $0x58] sm:$0xff]
        %v1370 = vld [vmem:[#allocation4 + $0x60] sm:$0xff]
        %v1371 = vld [vmem:[#allocation4 + $0x68] sm:$0xff]
        %v1372 = vld [vmem:[#allocation4 + $0x70] sm:$0xff]
        %v1373 = vld [vmem:[#allocation4 + $0x78] sm:$0xff]
        %v1374 = vld [vmem:[%s368] sm:$0xff]
        %v1375 = vld [vmem:[%s368 + $0x8] sm:$0xff]
        %v1376 = vld [vmem:[%s368 + $0x10] sm:$0xff]
        %v1377 = vld [vmem:[%s368 + $0x18] sm:$0xff]
        %v1378 = vld [vmem:[%s368 + $0x20] sm:$0xff]
        %v1379 = vld [vmem:[%s368 + $0x28] sm:$0xff]
        %v1380 = vld [vmem:[%s368 + $0x30] sm:$0xff]
        %v1381 = vld [vmem:[%s368 + $0x38] sm:$0xff]
        %v1382 = vld [vmem:[%s368 + $0x40] sm:$0xff]
        %v1383 = vld [vmem:[%s368 + $0x48] sm:$0xff]
        %v1384 = vld [vmem:[%s368 + $0x50] sm:$0xff]
        %v1385 = vld [vmem:[%s368 + $0x58] sm:$0xff]
        %v1386 = vld [vmem:[%s368 + $0x60] sm:$0xff]
        %v1387 = vld [vmem:[%s368 + $0x68] sm:$0xff]
        %v1388 = vld [vmem:[%s368 + $0x70] sm:$0xff]
        %v1389 = vld [vmem:[%s368 + $0x78] sm:$0xff]
        %v1390 = vsub.f32 %v1358, %v1374
        %v1391 = vsub.f32 %v1359, %v1375
        %v1392 = vsub.f32 %v1360, %v1376
        %v1393 = vsub.f32 %v1361, %v1377
        %v1394 = vsub.f32 %v1362, %v1378
        %v1395 = vsub.f32 %v1363, %v1379
        %v1396 = vsub.f32 %v1364, %v1380
        %v1397 = vsub.f32 %v1365, %v1381
        %v1398 = vsub.f32 %v1366, %v1382
        %v1399 = vsub.f32 %v1367, %v1383
        %v1400 = vsub.f32 %v1368, %v1384
        %v1401 = vsub.f32 %v1369, %v1385
        %v1402 = vsub.f32 %v1370, %v1386
        %v1403 = vsub.f32 %v1371, %v1387
        %v1404 = vsub.f32 %v1372, %v1388
        %v1405 = vsub.f32 %v1373, %v1389
        %v1406 = vld [vmem:[%s374] sm:$0xff]
        %v1407 = vld [vmem:[%s374 + $0x8] sm:$0xff]
        %v1408 = vld [vmem:[%s374 + $0x10] sm:$0xff]
        %v1409 = vld [vmem:[%s374 + $0x18] sm:$0xff]
        %v1410 = vld [vmem:[%s374 + $0x20] sm:$0xff]
        %v1411 = vld [vmem:[%s374 + $0x28] sm:$0xff]
        %v1412 = vld [vmem:[%s374 + $0x30] sm:$0xff]
        %v1413 = vld [vmem:[%s374 + $0x38] sm:$0xff]
        %v1414 = vld [vmem:[%s374 + $0x40] sm:$0xff]
        %v1415 = vld [vmem:[%s374 + $0x48] sm:$0xff]
        %v1416 = vld [vmem:[%s374 + $0x50] sm:$0xff]
        %v1417 = vld [vmem:[%s374 + $0x58] sm:$0xff]
        %v1418 = vld [vmem:[%s374 + $0x60] sm:$0xff]
        %v1419 = vld [vmem:[%s374 + $0x68] sm:$0xff]
        %v1420 = vld [vmem:[%s374 + $0x70] sm:$0xff]
        %v1421 = vld [vmem:[%s374 + $0x78] sm:$0xff]
        %v1422 = vadd.f32 %v1342, 1e-09
        %v1423 = vadd.f32 %v1343, 1e-09
        %v1424 = vadd.f32 %v1344, 1e-09
        %v1425 = vadd.f32 %v1345, 1e-09
        %v1426 = vadd.f32 %v1346, 1e-09
        %v1427 = vadd.f32 %v1347, 1e-09
        %v1428 = vadd.f32 %v1348, 1e-09
        %v1429 = vadd.f32 %v1349, 1e-09
        %v1430 = vadd.f32 %v1350, 1e-09
        %v1431 = vadd.f32 %v1351, 1e-09
        %v1432 = vadd.f32 %v1352, 1e-09
        %v1433 = vadd.f32 %v1353, 1e-09
        %v1434 = vadd.f32 %v1354, 1e-09
        %v1435 = vadd.f32 %v1355, 1e-09
        %v1436 = vadd.f32 %v1356, 1e-09
        %v1437 = vadd.f32 %v1357, 1e-09
        %v1438 = vlog2.pop %v1422
        %v1439 = vmul.f32 %v1438, 0.6931472
        %v1440 = vlog2.pop %v1423
        %v1441 = vmul.f32 %v1440, 0.6931472
        %v1442 = vlog2.pop %v1424
        %v1443 = vmul.f32 %v1442, 0.6931472
        %v1444 = vlog2.pop %v1425
        %v1445 = vmul.f32 %v1444, 0.6931472
        %v1446 = vlog2.pop %v1426
        %v1447 = vmul.f32 %v1446, 0.6931472
        %v1448 = vlog2.pop %v1427
        %v1449 = vmul.f32 %v1448, 0.6931472
        %v1450 = vlog2.pop %v1428
        %v1451 = vmul.f32 %v1450, 0.6931472
        %v1452 = vlog2.pop %v1429
        %v1453 = vmul.f32 %v1452, 0.6931472
        %v1454 = vlog2.pop %v1430
        %v1455 = vmul.f32 %v1454, 0.6931472
        %v1456 = vlog2.pop %v1431
        %v1457 = vmul.f32 %v1456, 0.6931472
        %v1458 = vlog2.pop %v1432
        %v1459 = vmul.f32 %v1458, 0.6931472
        %v1460 = vlog2.pop %v1433
        %v1461 = vmul.f32 %v1460, 0.6931472
        %v1462 = vlog2.pop %v1434
        %v1463 = vmul.f32 %v1462, 0.6931472
        %v1464 = vlog2.pop %v1435
        %v1465 = vmul.f32 %v1464, 0.6931472
        %v1466 = vlog2.pop %v1436
        %v1467 = vmul.f32 %v1466, 0.6931472
        %v1468 = vlog2.pop %v1437
        %v1469 = vmul.f32 %v1468, 0.6931472
        %v1470 = vadd.f32 %v1150, %v1439
        %v1471 = vadd.f32 %v1151, %v1441
        %v1472 = vadd.f32 %v1152, %v1443
        %v1473 = vadd.f32 %v1153, %v1445
        %v1474 = vadd.f32 %v1154, %v1447
        %v1475 = vadd.f32 %v1155, %v1449
        %v1476 = vadd.f32 %v1156, %v1451
        %v1477 = vadd.f32 %v1157, %v1453
        %v1478 = vadd.f32 %v1158, %v1455
        %v1479 = vadd.f32 %v1159, %v1457
        %v1480 = vadd.f32 %v1160, %v1459
        %v1481 = vadd.f32 %v1161, %v1461
        %v1482 = vadd.f32 %v1162, %v1463
        %v1483 = vadd.f32 %v1163, %v1465
        %v1484 = vadd.f32 %v1164, %v1467
        %v1485 = vadd.f32 %v1165, %v1469
        %v1486 = vmul.f32 %v1406, %v1470
        %v1487 = vmul.f32 %v1407, %v1471
        %v1488 = vmul.f32 %v1408, %v1472
        %v1489 = vmul.f32 %v1409, %v1473
        %v1490 = vmul.f32 %v1410, %v1474
        %v1491 = vmul.f32 %v1411, %v1475
        %v1492 = vmul.f32 %v1412, %v1476
        %v1493 = vmul.f32 %v1413, %v1477
        %v1494 = vmul.f32 %v1414, %v1478
        %v1495 = vmul.f32 %v1415, %v1479
        %v1496 = vmul.f32 %v1416, %v1480
        %v1497 = vmul.f32 %v1417, %v1481
        %v1498 = vmul.f32 %v1418, %v1482
        %v1499 = vmul.f32 %v1419, %v1483
        %v1500 = vmul.f32 %v1420, %v1484
        %v1501 = vmul.f32 %v1421, %v1485
        %v1502 = vsub.f32 %v1390, %v1486
        %v1503 = vsub.f32 %v1391, %v1487
        %v1504 = vsub.f32 %v1392, %v1488
        %v1505 = vsub.f32 %v1393, %v1489
        %v1506 = vsub.f32 %v1394, %v1490
        %v1507 = vsub.f32 %v1395, %v1491
        %v1508 = vsub.f32 %v1396, %v1492
        %v1509 = vsub.f32 %v1397, %v1493
        %v1510 = vsub.f32 %v1398, %v1494
        %v1511 = vsub.f32 %v1399, %v1495
        %v1512 = vsub.f32 %v1400, %v1496
        %v1513 = vsub.f32 %v1401, %v1497
        %v1514 = vsub.f32 %v1402, %v1498
        %v1515 = vsub.f32 %v1403, %v1499
        %v1516 = vsub.f32 %v1404, %v1500
        %v1517 = vsub.f32 %v1405, %v1501
        %vm1518 = vcmp.eq.f32.partialorder %v1406, 0.0
        %vm1519 = vcmp.eq.f32.partialorder %v1407, 0.0
        %vm1520 = vcmp.eq.f32.partialorder %v1408, 0.0
        %vm1521 = vcmp.eq.f32.partialorder %v1409, 0.0
        %vm1522 = vcmp.eq.f32.partialorder %v1410, 0.0
        %vm1523 = vcmp.eq.f32.partialorder %v1411, 0.0
        %vm1524 = vcmp.eq.f32.partialorder %v1412, 0.0
        %vm1525 = vcmp.eq.f32.partialorder %v1413, 0.0
        %vm1526 = vcmp.eq.f32.partialorder %v1414, 0.0
        %vm1527 = vcmp.eq.f32.partialorder %v1415, 0.0
        %vm1528 = vcmp.eq.f32.partialorder %v1416, 0.0
        %vm1529 = vcmp.eq.f32.partialorder %v1417, 0.0
        %vm1530 = vcmp.eq.f32.partialorder %v1418, 0.0
        %vm1531 = vcmp.eq.f32.partialorder %v1419, 0.0
        %vm1532 = vcmp.eq.f32.partialorder %v1420, 0.0
        %vm1533 = vcmp.eq.f32.partialorder %v1421, 0.0
        %v1534 = vsel %vm1518, 0.0, %v1502
        %v1535 = vsel %vm1519, 0.0, %v1503
        %v1536 = vsel %vm1520, 0.0, %v1504
        %v1537 = vsel %vm1521, 0.0, %v1505
        %v1538 = vsel %vm1522, 0.0, %v1506
        %v1539 = vsel %vm1523, 0.0, %v1507
        %v1540 = vsel %vm1524, 0.0, %v1508
        %v1541 = vsel %vm1525, 0.0, %v1509
        %v1542 = vsel %vm1526, 0.0, %v1510
        %v1543 = vsel %vm1527, 0.0, %v1511
        %v1544 = vsel %vm1528, 0.0, %v1512
        %v1545 = vsel %vm1529, 0.0, %v1513
        %v1546 = vsel %vm1530, 0.0, %v1514
        %v1547 = vsel %vm1531, 0.0, %v1515
        %v1548 = vsel %vm1532, 0.0, %v1516
        %v1549 = vsel %vm1533, 0.0, %v1517
        %v1550 = vadd.f32 %v1406, 1e-09
        %v1551 = vadd.f32 %v1407, 1e-09
        %v1552 = vadd.f32 %v1408, 1e-09
        %v1553 = vadd.f32 %v1409, 1e-09
        %v1554 = vadd.f32 %v1410, 1e-09
        %v1555 = vadd.f32 %v1411, 1e-09
        %v1556 = vadd.f32 %v1412, 1e-09
        %v1557 = vadd.f32 %v1413, 1e-09
        %v1558 = vadd.f32 %v1414, 1e-09
        %v1559 = vadd.f32 %v1415, 1e-09
        %v1560 = vadd.f32 %v1416, 1e-09
        %v1561 = vadd.f32 %v1417, 1e-09
        %v1562 = vadd.f32 %v1418, 1e-09
        %v1563 = vadd.f32 %v1419, 1e-09
        %v1564 = vadd.f32 %v1420, 1e-09
        %v1565 = vadd.f32 %v1421, 1e-09
        %v1566 = vrcp.pop %v1550
        %v1567 = vmul.f32 %v1534, %v1566
        %v1568 = vrcp.pop %v1551
        %v1569 = vmul.f32 %v1535, %v1568
        %v1570 = vrcp.pop %v1552
        %v1571 = vmul.f32 %v1536, %v1570
        %v1572 = vrcp.pop %v1553
        %v1573 = vmul.f32 %v1537, %v1572
        %v1574 = vrcp.pop %v1554
        %v1575 = vmul.f32 %v1538, %v1574
        %v1576 = vrcp.pop %v1555
        %v1577 = vmul.f32 %v1539, %v1576
        %v1578 = vrcp.pop %v1556
        %v1579 = vmul.f32 %v1540, %v1578
        %v1580 = vrcp.pop %v1557
        %v1581 = vmul.f32 %v1541, %v1580
        %v1582 = vrcp.pop %v1558
        %v1583 = vmul.f32 %v1542, %v1582
        %v1584 = vrcp.pop %v1559
        %v1585 = vmul.f32 %v1543, %v1584
        %v1586 = vrcp.pop %v1560
        %v1587 = vmul.f32 %v1544, %v1586
        %v1588 = vrcp.pop %v1561
        %v1589 = vmul.f32 %v1545, %v1588
        %v1590 = vrcp.pop %v1562
        %v1591 = vmul.f32 %v1546, %v1590
        %v1592 = vrcp.pop %v1563
        %v1593 = vmul.f32 %v1547, %v1592
        %v1594 = vrcp.pop %v1564
        %v1595 = vmul.f32 %v1548, %v1594
        %v1596 = vrcp.pop %v1565
        %v1597 = vmul.f32 %v1549, %v1596
        %v1598 = vmul.f32 %v1567, -1.4285715
        %v1599 = vmul.f32 %v1569, -1.4285715
        %v1600 = vmul.f32 %v1571, -1.4285715
        %v1601 = vmul.f32 %v1573, -1.4285715
        %v1602 = vmul.f32 %v1575, -1.4285715
        %v1603 = vmul.f32 %v1577, -1.4285715
        %v1604 = vmul.f32 %v1579, -1.4285715
        %v1605 = vmul.f32 %v1581, -1.4285715
        %v1606 = vmul.f32 %v1583, -1.4285715
        %v1607 = vmul.f32 %v1585, -1.4285715
        %v1608 = vmul.f32 %v1587, -1.4285715
        %v1609 = vmul.f32 %v1589, -1.4285715
        %v1610 = vmul.f32 %v1591, -1.4285715
        %v1611 = vmul.f32 %v1593, -1.4285715
        %v1612 = vmul.f32 %v1595, -1.4285715
        %v1613 = vmul.f32 %v1597, -1.4285715
        %1614 = vst.msk [vmem:[%s380] sm:$0xff] %vm777, %v1598
        %1615 = vst.msk [vmem:[%s380 + $0x8] sm:$0xff] %vm777, %v1599
        %1616 = vst.msk [vmem:[%s380 + $0x10] sm:$0xff] %vm777, %v1600
        %1617 = vst.msk [vmem:[%s380 + $0x18] sm:$0xff] %vm777, %v1601
        %1618 = vst.msk [vmem:[%s380 + $0x20] sm:$0xff] %vm777, %v1602
        %1619 = vst.msk [vmem:[%s380 + $0x28] sm:$0xff] %vm777, %v1603
        %1620 = vst.msk [vmem:[%s380 + $0x30] sm:$0xff] %vm777, %v1604
        %1621 = vst.msk [vmem:[%s380 + $0x38] sm:$0xff] %vm777, %v1605
        %1622 = vst.msk [vmem:[%s380 + $0x40] sm:$0xff] %vm777, %v1606
        %1623 = vst.msk [vmem:[%s380 + $0x48] sm:$0xff] %vm777, %v1607
        %1624 = vst.msk [vmem:[%s380 + $0x50] sm:$0xff] %vm777, %v1608
        %1625 = vst.msk [vmem:[%s380 + $0x58] sm:$0xff] %vm777, %v1609
        %1626 = vst.msk [vmem:[%s380 + $0x60] sm:$0xff] %vm777, %v1610
        %1627 = vst.msk [vmem:[%s380 + $0x68] sm:$0xff] %vm777, %v1611
        %1628 = vst.msk [vmem:[%s380 + $0x70] sm:$0xff] %vm777, %v1612
        %1629 = vst.msk [vmem:[%s380 + $0x78] sm:$0xff] %vm777, %v1613
      $region56: #{tpu_custom_call.1} parent=47 // pred_fallthru
        _
      %s1630 = smul.u32 16, %s22
      %p1631 = scmp.lt.s32.totalorder %s1630, 31
      %s1632 = scalar_select %p1631, %s1630, 31
      %s1633 = smul.addr %s1632, 8
      %s1634 = scalar_lea.vmem %s7, %s1633
      // Predicated region
      $region57: #{tpu_custom_call.1} parent=47 // pred_check
        %p1635 = pneg %p220
      $region58: #{tpu_custom_call.1} parent=47 // pred_check_branch
        %1637 = sbr.rel (%p1635) target = $region60
      $region59: #{tpu_custom_call.1} parent=47 // pred_region
        %s1638 = smul.u32 16, %s22
      $region60: #{tpu_custom_call.1} parent=47 // pred_fallthru
        _
    $region48: #{tpu_custom_call.1} parent=5 // pred_fallthru
      _
    %p1639 = scmp.le.s32.totalorder 2, %s13
    // Predicated region
    $region61: #{tpu_custom_call.1} parent=5 // pred_check
      %p1640 = pneg %p1639
    $region62: #{tpu_custom_call.1} parent=5 // pred_check_branch
      %1642 = sbr.rel (%p1640) target = $region64
    $region63: #{tpu_custom_call.1} parent=5 // pred_region
      %s1643 = ssub.s32 %s13, 2
      // Predicated region
      $region65: #{tpu_custom_call.1} parent=63 // pred_check
        %p1644 = pneg %p226
      $region66: #{tpu_custom_call.1} parent=63 // pred_check_branch
        %1646 = sbr.rel (%p1644) target = $region68
      $region67: #{tpu_custom_call.1} parent=63 // pred_region
        %s1647 = smul.u32 16, %s24
        %p1648 = scmp.lt.s32.totalorder %s1647, 31
        %s1649 = scalar_select %p1648, %s1647, 31
        %s1650 = smul.addr %s1649, 8
        %s1651 = scalar_lea.vmem %s7, %s1650
      $region68: #{tpu_custom_call.1} parent=63 // pred_fallthru
        _
    $region64: #{tpu_custom_call.1} parent=5 // pred_fallthru
      _
  $region6: #{tpu_custom_call.1} parent=0 // loop_footer
    %s17 = sadd.s32 1, %s13
  $region7: #{tpu_custom_call.1} parent=0 // loop_footer_branch
    %12 = sbr.rel target = $region3
  $region8: #{tpu_custom_call.1} parent=0 // loop_exit
    _

</llo_original>
